<compile_context>
chip_gen: v6e
topology: v6e:2x2x1
jax: 0.10.0
libtpu: 0.0.40
codegen_flags: <defaults>
</compile_context>

<pallas_src>
import functools
import math

import jax
import jax.numpy as jnp
from jax.experimental import pallas as pl
from jax.experimental.pallas import tpu as pltpu


def _mi_kernel(seed_ref, rgb_ref, pt_ref, ev_ref, *rest, ch, tm, hw_valid,
               use_device_prng, approx_recip, ew_dtype):
    """One (Cin, tm) pixel tile: L2norm, fused mu|logvar heads, reparametrize,
    per-tile BCE/KL partial sums."""
    if use_device_prng:
        w_ref, b_ref, zr_ref, zp_ref, ze_ref, part_ref = rest
        eps_ref = None
        # TODO(synk): the eps stream depends on (seed, grid position), so it is
        # not invariant to the tile size and not bit-identical to torch
        # .normal_(); pltpu.sample_block could make it grid-invariant.
        pltpu.prng_seed(seed_ref[0], pl.program_id(0), pl.program_id(1))
    else:
        eps_ref, w_ref, b_ref, zr_ref, zp_ref, ze_ref, part_ref = rest

    def modality(x_ref, idx, z_out_ref):
        # torch_L2normalize over the channel (sublane) axis, rsqrt form.
        x = x_ref[...]
        x = x * jax.lax.rsqrt(jnp.sum(x * x, axis=0, keepdims=True) + 1e-6)
        # Fused mu|logvar head: (2*Ch, Cin) @ (Cin, tm); one tanh on 2*Ch rows.
        y = jnp.dot(w_ref[idx], x, preferred_element_type=jnp.float32)
        y = jnp.tanh((y + b_ref[idx]).astype(ew_dtype))
        mu = y[:ch, :]
        lv = y[ch:, :]
        # reparametrize: z = eps * exp(0.5*logvar) + mu
        std = jnp.exp(0.5 * lv)
        if use_device_prng:
            eps = pltpu.stateful_normal((ch, tm), jnp.float32).astype(ew_dtype)
        else:
            eps = eps_ref[idx * ch:(idx + 1) * ch, :].astype(ew_dtype)
        z = eps * std + mu
        z_out_ref[...] = z.astype(z_out_ref.dtype)       # lane-dense store
        # sigmoid + log terms, hoisted once per modality (shared by all BCE).
        ez = jnp.exp(-z)
        if approx_recip and ew_dtype == jnp.float32:
            s = jnp.minimum(pl.reciprocal(1.0 + ez, approx=True), 1.0)
        else:
            s = (1.0 / (1.0 + ez)).astype(ew_dtype)
        log_s_raw = jnp.log(s)
        log_s = jnp.maximum(log_s_raw, -100.0)           # PyTorch BCE log clamp
        # log(1 - sigmoid(z)) == log(sigmoid(z)) - z     (no second log pass)
        log_1ms = jnp.maximum(log_s_raw - z, -100.0)
        # KL ingredients.  The original module builds Normal(scale=exp(logvar)),
        # i.e. the distribution std is exp(lv) (NOT exp(0.5*lv)).
        var = std * std                                  # exp(lv)     (VPU)
        e2lv = var * var                                 # exp(2*lv)   (VPU)
        em2lv = jnp.exp(-2.0 * lv)                       # exp(-2*lv)  (EUP)
        return dict(mu=mu, lv=lv, s=s, log_s=log_s, log_1ms=log_1ms,
                    e2lv=e2lv, em2lv=em2lv)

    r = modality(rgb_ref, 0, zr_ref)
    p = modality(pt_ref, 1, zp_ref)
    e = modality(ev_ref, 2, ze_ref)

    def bce_elem(pred, tgt):
        # elementwise BCE(pred = sigmoid(z_pred), target = sigmoid(z_tgt))
        return -(tgt["s"] * pred["log_s"] + (1.0 - tgt["s"]) * pred["log_1ms"])

    def kl_elem(a, b):
        # KL( N(mu_a, exp(lv_a)) || N(mu_b, exp(lv_b)) ), elementwise
        d = a["mu"] - b["mu"]
        return (b["lv"] - a["lv"]) + 0.5 * (a["e2lv"] + d * d) * b["em2lv"] - 0.5

    bce = (bce_elem(r, p) + bce_elem(p, r) + bce_elem(r, e)
           + bce_elem(e, r) + bce_elem(p, e) + bce_elem(e, p))
    kld = (kl_elem(r, p) + kl_elem(p, r) + kl_elem(e, p)
           + kl_elem(p, e) + kl_elem(r, e) + kl_elem(e, r))

    if hw_valid is not None:
        # Remainder path: pixels >= hw_valid are padding; drop their loss terms.
        pix = (pl.program_id(1) * tm
               + jax.lax.broadcasted_iota(jnp.int32, (1, tm), 1))
        valid = pix < hw_valid
        bce = jnp.where(valid, bce, 0.0)
        kld = jnp.where(valid, kld, 0.0)

    bce_sum = jnp.sum(bce.astype(jnp.float32))
    kl_sum = jnp.sum(kld.astype(jnp.float32))

    # Merged per-tile partials in one full (8,128) tile (unmasked store):
    # sublanes 0-3 hold the BCE partial, sublanes 4-7 the KL partial.
    row = jax.lax.broadcasted_iota(jnp.int32, (8, 128), 0)
    part_ref[...] = jnp.where(row < 4, bce_sum, kl_sum)


def _pick_tile(hw_pad, n_batch, cap=2048):
    """Largest multiple-of-128 divisor of hw_pad <= cap, preferring >= 2 total
    grid steps so a v7x megacore can shard the parallel axes."""
    k = hw_pad // 128
    divs = [d for d in range(1, k + 1) if k % d == 0 and 128 * d <= cap]
    for d in sorted(divs, reverse=True):
        if n_batch * (k // d) >= 2:
            return 128 * d
    return 128 * max(divs)


def mutual_info_forward(rgb, point, event, params, seed, *, tm=None,
                        elementwise_dtype=None, use_device_prng=None):
    """Forward pass of Mutual_info_reg_2D_Event.

    params["w"]: (6, Ch, Cin) 1x1-conv weights in native torch layout (each
                 torch weight (Ch, Cin, 1, 1) squeezed), ordered
                 [rgb_mu, rgb_logvar, point_mu, point_logvar, event_mu, event_logvar].
    params["b"]: (6, Ch) biases, same order.
    Returns (latent_loss, z_rgb, z_point, z_event) with z_* in NCHW.
    """
    N, Cin, H, W = rgb.shape
    Ch = params["w"].shape[1]
    hw = H * W
    hw_pad = ((hw + 127) // 128) * 128

    on_tpu = jax.default_backend() == "tpu"
    if use_device_prng is None:
        use_device_prng = on_tpu              # prng_seed has no CPU lowering
    approx_recip = on_tpu                     # approx reciprocal is Mosaic-only
    if elementwise_dtype is None:
        elementwise_dtype = jnp.float32
        if on_tpu:
            kind = jax.devices()[0].device_kind.lower()
            if ("v6" in kind) or ("v7" in kind) or ("7x" in kind):
                # bf16 VPU/EUP exist on v6e/v7x; keep f32 on v5e (no bf16 VPU).
                elementwise_dtype = jnp.bfloat16

    if tm is None:
        tm = _pick_tile(hw_pad, N)
    assert hw_pad % tm == 0 and tm % 128 == 0
    grid = (N, hw_pad // tm)

    def flat(x):   # NCHW -> (N, Cin, H*W): pure reshape, channel on sublane
        x = x.reshape(N, Cin, hw).astype(jnp.float32)
        if hw_pad != hw:
            x = jnp.pad(x, ((0, 0), (0, 0), (0, hw_pad - hw)))
        return x

    rgb_f, pt_f, ev_f = flat(rgb), flat(point), flat(event)

    # Pack mu|logvar per modality along the out-channel (sublane) axis:
    # w -> (3, 2*Ch, Cin), b -> (3, 2*Ch, 1).  Native torch (out, in) layout,
    # so no weight transposes are needed either.
    w6 = params["w"].astype(jnp.float32)
    b6 = params["b"].astype(jnp.float32)
    w_packed = jnp.concatenate([w6[0::2], w6[1::2]], axis=1)
    b_packed = jnp.concatenate([b6[0::2], b6[1::2]], axis=1)[..., None]

    seed_arr = jnp.asarray([seed], dtype=jnp.int32)

    feat_spec = pl.BlockSpec((None, Cin, tm), lambda n, p, s: (n, 0, p))
    w_spec = pl.BlockSpec((3, 2 * Ch, Cin), lambda n, p, s: (0, 0, 0))
    b_spec = pl.BlockSpec((3, 2 * Ch, 1), lambda n, p, s: (0, 0, 0))
    z_spec = pl.BlockSpec((None, Ch, tm), lambda n, p, s: (n, 0, p))
    part_spec = pl.BlockSpec((None, None, 8, 128), lambda n, p, s: (n, p, 0, 0))

    in_specs = [feat_spec, feat_spec, feat_spec]
    inputs = [rgb_f, pt_f, ev_f]
    if not use_device_prng:
        # TODO(synk): host-side eps (jax.random) is N(0,1) but not bit-identical
        # to torch .normal_(); only used on backends without the TPU PRNG.
        eps = jax.random.normal(jax.random.PRNGKey(int(seed)),
                                (N, 3 * Ch, hw_pad), jnp.float32)
        in_specs.append(pl.BlockSpec((None, 3 * Ch, tm), lambda n, p, s: (n, 0, p)))
        inputs.append(eps)
    in_specs += [w_spec, b_spec]
    inputs += [w_packed, b_packed]

    out_shape = (
        jax.ShapeDtypeStruct((N, Ch, hw_pad), jnp.float32),
        jax.ShapeDtypeStruct((N, Ch, hw_pad), jnp.float32),
        jax.ShapeDtypeStruct((N, Ch, hw_pad), jnp.float32),
        jax.ShapeDtypeStruct((N, grid[1], 8, 128), jnp.float32),
    )

    kernel = functools.partial(
        _mi_kernel, ch=Ch, tm=tm, hw_valid=(hw if hw_pad != hw else None),
        use_device_prng=use_device_prng, approx_recip=approx_recip,
        ew_dtype=elementwise_dtype)

    zr, zp, ze, part = pl.pallas_call(
        kernel,
        out_shape=out_shape,
        grid_spec=pltpu.PrefetchScalarGridSpec(
            num_scalar_prefetch=1,
            grid=grid,
            in_specs=in_specs,
            out_specs=[z_spec, z_spec, z_spec, part_spec],
        ),
        compiler_params=pltpu.CompilerParams(
            dimension_semantics=("parallel", "parallel")),
    )(seed_arr, *inputs)

    # Finalize the scalar loss (glue on a handful of scalars).
    bce_total = jnp.sum(part[:, :, 0, 0])
    kl_total = jnp.sum(part[:, :, 4, 0])
    n_elem = N * Ch * H * W
    ce_sum = bce_total / n_elem            # sum of the 6 BCE means (reduction='mean')
    kl_mean_sum = kl_total * W / n_elem    # Independent(...,1): sum over W, mean over N*Ch*H
    latent_loss = (ce_sum - kl_mean_sum) / (H * W)

    def unflat(z):  # (N, Ch, hw_pad) -> NCHW (crop padded pixels, pure reshape)
        return z[:, :, :hw].reshape(N, Ch, H, W)

    return latent_loss, unflat(zr), unflat(zp), unflat(ze)


if __name__ == "__main__":
    N, Cin, Ch, H, W = 2, 4, 32, 16, 16

    key = jax.random.PRNGKey(0)
    k = jax.random.split(key, 5)

    rgb_feat = jax.random.normal(k[0], (N, Cin, H, W), jnp.float32)
    point_feat = jax.random.normal(k[1], (N, Cin, H, W), jnp.float32)
    event_feat = jax.random.normal(k[2], (N, Cin, H, W), jnp.float32)

    # 6 heads in native torch (out_ch, in_ch) layout:
    # [rgb_mu, rgb_logvar, point_mu, point_logvar, event_mu, event_logvar]
    params = {
        "w": 0.1 * jax.random.normal(k[3], (6, Ch, Cin), jnp.float32),
        "b": 0.01 * jax.random.normal(k[4], (6, Ch), jnp.float32),
    }

    out = mutual_info_forward(rgb_feat, point_feat, event_feat, params, seed=0)
    out = jax.block_until_ready(out)

    loss = float(out[0])
    assert math.isfinite(loss), loss
    assert out[1].shape == (N, Ch, H, W)
    assert out[2].shape == (N, Ch, H, W)
    assert out[3].shape == (N, Ch, H, W)
    print("KERNEL_OK")
</pallas_src>

<mosaic_0001>
module attributes {stable_mosaic.version = 11 : i64} {
  func.func @_mi_kernel(%arg0: i32, %arg1: i32, %arg2: memref<1xi32, #tpu.memory_space<smem>>, %arg3: memref<1x4x256xf32, #tpu.memory_space<vmem>>, %arg4: memref<1x4x256xf32, #tpu.memory_space<vmem>>, %arg5: memref<1x4x256xf32, #tpu.memory_space<vmem>>, %arg6: memref<1x96x256xf32, #tpu.memory_space<vmem>>, %arg7: memref<3x64x4xf32, #tpu.memory_space<vmem>>, %arg8: memref<3x64x1xf32, #tpu.memory_space<vmem>>, %arg9: memref<1x32x256xf32, #tpu.memory_space<vmem>>, %arg10: memref<1x32x256xf32, #tpu.memory_space<vmem>>, %arg11: memref<1x32x256xf32, #tpu.memory_space<vmem>>, %arg12: memref<1x1x8x128xf32, #tpu.memory_space<vmem>>) attributes {dimension_semantics = [#tpu.dimension_semantics<parallel>, #tpu.dimension_semantics<parallel>], iteration_bounds = array<i64: 2, 1>, scalar_prefetch = 1 : i64, scratch_operands = 0 : i64, tpu.core_type = #tpu.core_type<tc>, window_params = [{transform_indices = @transform_0, window_bounds = array<i64: 1, 4, 256>}, {transform_indices = @transform_1, window_bounds = array<i64: 1, 4, 256>}, {transform_indices = @transform_2, window_bounds = array<i64: 1, 4, 256>}, {transform_indices = @transform_3, window_bounds = array<i64: 1, 96, 256>}, {pipeline_mode = #tpu.pipeline_mode<synchronous>, transform_indices = @transform_4, window_bounds = array<i64: 3, 64, 4>}, {pipeline_mode = #tpu.pipeline_mode<synchronous>, transform_indices = @transform_5, window_bounds = array<i64: 3, 64, 1>}, {transform_indices = @transform_6, window_bounds = array<i64: 1, 32, 256>}, {transform_indices = @transform_7, window_bounds = array<i64: 1, 32, 256>}, {transform_indices = @transform_8, window_bounds = array<i64: 1, 32, 256>}, {transform_indices = @transform_9, window_bounds = array<i64: 1, 1, 8, 128>}]} {
    %c0 = arith.constant 0 : index
    %c0_0 = arith.constant 0 : index
    %c0_1 = arith.constant 0 : index
    %0 = vector.load %arg3[%c0, %c0_0, %c0_1] : memref<1x4x256xf32, #tpu.memory_space<vmem>>, vector<1x4x256xf32>
    %1 = vector.shape_cast %0 : vector<1x4x256xf32> to vector<4x256xf32>
    %2 = arith.mulf %1, %1 : vector<4x256xf32>
    %cst = arith.constant dense<0.000000e+00> : vector<256xf32>
    %3 = vector.multi_reduction <add>, %2, %cst [0] : vector<4x256xf32> to vector<256xf32>
    %4 = vector.shape_cast %3 : vector<256xf32> to vector<1x256xf32>
    %cst_2 = arith.constant 9.99999997E-7 : f32
    %5 = vector.broadcast %cst_2 : f32 to vector<1x256xf32>
    %6 = arith.addf %4, %5 : vector<1x256xf32>
    %7 = math.rsqrt %6 : vector<1x256xf32>
    %8 = vector.broadcast %7 : vector<1x256xf32> to vector<4x256xf32>
    %9 = arith.mulf %1, %8 : vector<4x256xf32>
    %c0_3 = arith.constant 0 : index
    %c0_4 = arith.constant 0 : index
    %c0_5 = arith.constant 0 : index
    %10 = vector.load %arg7[%c0_3, %c0_4, %c0_5] : memref<3x64x4xf32, #tpu.memory_space<vmem>>, vector<1x64x4xf32>
    %11 = vector.shape_cast %10 : vector<1x64x4xf32> to vector<64x4xf32>
    %cst_6 = arith.constant dense<0.000000e+00> : vector<64x256xf32>
    %12 = tpu.matmul %11, %9, %cst_6 {dimension_numbers = #tpu.dot_dimension_numbers<[1], [0], [0], [1], [0, 0, 1, 1], [], []>} : vector<64x4xf32>, vector<4x256xf32>, vector<64x256xf32> -> vector<64x256xf32>
    %c0_7 = arith.constant 0 : index
    %c0_8 = arith.constant 0 : index
    %c0_9 = arith.constant 0 : index
    %13 = vector.load %arg8[%c0_7, %c0_8, %c0_9] : memref<3x64x1xf32, #tpu.memory_space<vmem>>, vector<1x64x1xf32>
    %14 = vector.shape_cast %13 : vector<1x64x1xf32> to vector<64x1xf32>
    %15 = vector.broadcast %14 : vector<64x1xf32> to vector<64x256xf32>
    %16 = arith.addf %12, %15 : vector<64x256xf32>
    %17 = math.tanh %16 : vector<64x256xf32>
    %18 = vector.extract_strided_slice %17 {offsets = [0, 0], sizes = [32, 256], strides = [1, 1]} : vector<64x256xf32> to vector<32x256xf32>
    %19 = vector.extract_strided_slice %17 {offsets = [32, 0], sizes = [32, 256], strides = [1, 1]} : vector<64x256xf32> to vector<32x256xf32>
    %cst_10 = arith.constant 5.000000e-01 : f32
    %20 = vector.broadcast %cst_10 : f32 to vector<32x256xf32>
    %21 = arith.mulf %20, %19 : vector<32x256xf32>
    %22 = math.exp %21 : vector<32x256xf32>
    %c0_11 = arith.constant 0 : index
    %c0_12 = arith.constant 0 : index
    %c0_13 = arith.constant 0 : index
    %23 = vector.load %arg6[%c0_11, %c0_12, %c0_13] : memref<1x96x256xf32, #tpu.memory_space<vmem>>, vector<1x32x256xf32>
    %24 = vector.shape_cast %23 : vector<1x32x256xf32> to vector<32x256xf32>
    %25 = arith.mulf %24, %22 : vector<32x256xf32>
    %26 = arith.addf %25, %18 : vector<32x256xf32>
    %c0_14 = arith.constant 0 : index
    %c0_15 = arith.constant 0 : index
    %c0_16 = arith.constant 0 : index
    %27 = vector.load %arg9[%c0_14, %c0_15, %c0_16] : memref<1x32x256xf32, #tpu.memory_space<vmem>>, vector<1x32x256xf32>
    %28 = vector.shape_cast %27 : vector<1x32x256xf32> to vector<32x256xf32>
    %29 = vector.shape_cast %26 : vector<32x256xf32> to vector<1x32x256xf32>
    tpu.vector_store %arg9[%c0_14, %c0_15, %c0_16], %29 {strides = array<i32>} : memref<1x32x256xf32, #tpu.memory_space<vmem>>, vector<1x32x256xf32>,
    %cst_17 = arith.constant 0.000000e+00 : f32
    %30 = vector.broadcast %cst_17 : f32 to vector<32x256xf32>
    %31 = arith.subf %30, %26 : vector<32x256xf32>
    %32 = math.exp %31 : vector<32x256xf32>
    %cst_18 = arith.constant 1.000000e+00 : f32
    %33 = vector.broadcast %cst_18 : f32 to vector<32x256xf32>
    %34 = arith.addf %33, %32 : vector<32x256xf32>
    %cst_19 = arith.constant 1.000000e+00 : f32
    %35 = vector.broadcast %cst_19 : f32 to vector<32x256xf32>
    %36 = arith.divf %35, %34 : vector<32x256xf32>
    %37 = math.log %36 : vector<32x256xf32>
    %cst_20 = arith.constant -1.000000e+02 : f32
    %38 = vector.broadcast %cst_20 : f32 to vector<32x256xf32>
    %39 = arith.maximumf %37, %38 : vector<32x256xf32>
    %40 = arith.subf %37, %26 : vector<32x256xf32>
    %cst_21 = arith.constant -1.000000e+02 : f32
    %41 = vector.broadcast %cst_21 : f32 to vector<32x256xf32>
    %42 = arith.maximumf %40, %41 : vector<32x256xf32>
    %43 = arith.mulf %22, %22 : vector<32x256xf32>
    %44 = arith.mulf %43, %43 : vector<32x256xf32>
    %cst_22 = arith.constant -2.000000e+00 : f32
    %45 = vector.broadcast %cst_22 : f32 to vector<32x256xf32>
    %46 = arith.mulf %45, %19 : vector<32x256xf32>
    %47 = math.exp %46 : vector<32x256xf32>
    %c0_23 = arith.constant 0 : index
    %c0_24 = arith.constant 0 : index
    %c0_25 = arith.constant 0 : index
    %48 = vector.load %arg4[%c0_23, %c0_24, %c0_25] : memref<1x4x256xf32, #tpu.memory_space<vmem>>, vector<1x4x256xf32>
    %49 = vector.shape_cast %48 : vector<1x4x256xf32> to vector<4x256xf32>
    %50 = arith.mulf %49, %49 : vector<4x256xf32>
    %cst_26 = arith.constant dense<0.000000e+00> : vector<256xf32>
    %51 = vector.multi_reduction <add>, %50, %cst_26 [0] : vector<4x256xf32> to vector<256xf32>
    %52 = vector.shape_cast %51 : vector<256xf32> to vector<1x256xf32>
    %cst_27 = arith.constant 9.99999997E-7 : f32
    %53 = vector.broadcast %cst_27 : f32 to vector<1x256xf32>
    %54 = arith.addf %52, %53 : vector<1x256xf32>
    %55 = math.rsqrt %54 : vector<1x256xf32>
    %56 = vector.broadcast %55 : vector<1x256xf32> to vector<4x256xf32>
    %57 = arith.mulf %49, %56 : vector<4x256xf32>
    %c1 = arith.constant 1 : index
    %c0_28 = arith.constant 0 : index
    %c0_29 = arith.constant 0 : index
    %58 = vector.load %arg7[%c1, %c0_28, %c0_29] : memref<3x64x4xf32, #tpu.memory_space<vmem>>, vector<1x64x4xf32>
    %59 = vector.shape_cast %58 : vector<1x64x4xf32> to vector<64x4xf32>
    %cst_30 = arith.constant dense<0.000000e+00> : vector<64x256xf32>
    %60 = tpu.matmul %59, %57, %cst_30 {dimension_numbers = #tpu.dot_dimension_numbers<[1], [0], [0], [1], [0, 0, 1, 1], [], []>} : vector<64x4xf32>, vector<4x256xf32>, vector<64x256xf32> -> vector<64x256xf32>
    %c1_31 = arith.constant 1 : index
    %c0_32 = arith.constant 0 : index
    %c0_33 = arith.constant 0 : index
    %61 = vector.load %arg8[%c1_31, %c0_32, %c0_33] : memref<3x64x1xf32, #tpu.memory_space<vmem>>, vector<1x64x1xf32>
    %62 = vector.shape_cast %61 : vector<1x64x1xf32> to vector<64x1xf32>
    %63 = vector.broadcast %62 : vector<64x1xf32> to vector<64x256xf32>
    %64 = arith.addf %60, %63 : vector<64x256xf32>
    %65 = math.tanh %64 : vector<64x256xf32>
    %66 = vector.extract_strided_slice %65 {offsets = [0, 0], sizes = [32, 256], strides = [1, 1]} : vector<64x256xf32> to vector<32x256xf32>
    %67 = vector.extract_strided_slice %65 {offsets = [32, 0], sizes = [32, 256], strides = [1, 1]} : vector<64x256xf32> to vector<32x256xf32>
    %cst_34 = arith.constant 5.000000e-01 : f32
    %68 = vector.broadcast %cst_34 : f32 to vector<32x256xf32>
    %69 = arith.mulf %68, %67 : vector<32x256xf32>
    %70 = math.exp %69 : vector<32x256xf32>
    %c0_35 = arith.constant 0 : index
    %c32 = arith.constant 32 : index
    %c0_36 = arith.constant 0 : index
    %71 = vector.load %arg6[%c0_35, %c32, %c0_36] : memref<1x96x256xf32, #tpu.memory_space<vmem>>, vector<1x32x256xf32>
    %72 = vector.shape_cast %71 : vector<1x32x256xf32> to vector<32x256xf32>
    %73 = arith.mulf %72, %70 : vector<32x256xf32>
    %74 = arith.addf %73, %66 : vector<32x256xf32>
    %c0_37 = arith.constant 0 : index
    %c0_38 = arith.constant 0 : index
    %c0_39 = arith.constant 0 : index
    %75 = vector.load %arg10[%c0_37, %c0_38, %c0_39] : memref<1x32x256xf32, #tpu.memory_space<vmem>>, vector<1x32x256xf32>
    %76 = vector.shape_cast %75 : vector<1x32x256xf32> to vector<32x256xf32>
    %77 = vector.shape_cast %74 : vector<32x256xf32> to vector<1x32x256xf32>
    tpu.vector_store %arg10[%c0_37, %c0_38, %c0_39], %77 {strides = array<i32>} : memref<1x32x256xf32, #tpu.memory_space<vmem>>, vector<1x32x256xf32>,
    %cst_40 = arith.constant 0.000000e+00 : f32
    %78 = vector.broadcast %cst_40 : f32 to vector<32x256xf32>
    %79 = arith.subf %78, %74 : vector<32x256xf32>
    %80 = math.exp %79 : vector<32x256xf32>
    %cst_41 = arith.constant 1.000000e+00 : f32
    %81 = vector.broadcast %cst_41 : f32 to vector<32x256xf32>
    %82 = arith.addf %81, %80 : vector<32x256xf32>
    %cst_42 = arith.constant 1.000000e+00 : f32
    %83 = vector.broadcast %cst_42 : f32 to vector<32x256xf32>
    %84 = arith.divf %83, %82 : vector<32x256xf32>
    %85 = math.log %84 : vector<32x256xf32>
    %cst_43 = arith.constant -1.000000e+02 : f32
    %86 = vector.broadcast %cst_43 : f32 to vector<32x256xf32>
    %87 = arith.maximumf %85, %86 : vector<32x256xf32>
    %88 = arith.subf %85, %74 : vector<32x256xf32>
    %cst_44 = arith.constant -1.000000e+02 : f32
    %89 = vector.broadcast %cst_44 : f32 to vector<32x256xf32>
    %90 = arith.maximumf %88, %89 : vector<32x256xf32>
    %91 = arith.mulf %70, %70 : vector<32x256xf32>
    %92 = arith.mulf %91, %91 : vector<32x256xf32>
    %cst_45 = arith.constant -2.000000e+00 : f32
    %93 = vector.broadcast %cst_45 : f32 to vector<32x256xf32>
    %94 = arith.mulf %93, %67 : vector<32x256xf32>
    %95 = math.exp %94 : vector<32x256xf32>
    %c0_46 = arith.constant 0 : index
    %c0_47 = arith.constant 0 : index
    %c0_48 = arith.constant 0 : index
    %96 = vector.load %arg5[%c0_46, %c0_47, %c0_48] : memref<1x4x256xf32, #tpu.memory_space<vmem>>, vector<1x4x256xf32>
    %97 = vector.shape_cast %96 : vector<1x4x256xf32> to vector<4x256xf32>
    %98 = arith.mulf %97, %97 : vector<4x256xf32>
    %cst_49 = arith.constant dense<0.000000e+00> : vector<256xf32>
    %99 = vector.multi_reduction <add>, %98, %cst_49 [0] : vector<4x256xf32> to vector<256xf32>
    %100 = vector.shape_cast %99 : vector<256xf32> to vector<1x256xf32>
    %cst_50 = arith.constant 9.99999997E-7 : f32
    %101 = vector.broadcast %cst_50 : f32 to vector<1x256xf32>
    %102 = arith.addf %100, %101 : vector<1x256xf32>
    %103 = math.rsqrt %102 : vector<1x256xf32>
    %104 = vector.broadcast %103 : vector<1x256xf32> to vector<4x256xf32>
    %105 = arith.mulf %97, %104 : vector<4x256xf32>
    %c2 = arith.constant 2 : index
    %c0_51 = arith.constant 0 : index
    %c0_52 = arith.constant 0 : index
    %106 = vector.load %arg7[%c2, %c0_51, %c0_52] : memref<3x64x4xf32, #tpu.memory_space<vmem>>, vector<1x64x4xf32>
    %107 = vector.shape_cast %106 : vector<1x64x4xf32> to vector<64x4xf32>
    %cst_53 = arith.constant dense<0.000000e+00> : vector<64x256xf32>
    %108 = tpu.matmul %107, %105, %cst_53 {dimension_numbers = #tpu.dot_dimension_numbers<[1], [0], [0], [1], [0, 0, 1, 1], [], []>} : vector<64x4xf32>, vector<4x256xf32>, vector<64x256xf32> -> vector<64x256xf32>
    %c2_54 = arith.constant 2 : index
    %c0_55 = arith.constant 0 : index
    %c0_56 = arith.constant 0 : index
    %109 = vector.load %arg8[%c2_54, %c0_55, %c0_56] : memref<3x64x1xf32, #tpu.memory_space<vmem>>, vector<1x64x1xf32>
    %110 = vector.shape_cast %109 : vector<1x64x1xf32> to vector<64x1xf32>
    %111 = vector.broadcast %110 : vector<64x1xf32> to vector<64x256xf32>
    %112 = arith.addf %108, %111 : vector<64x256xf32>
    %113 = math.tanh %112 : vector<64x256xf32>
    %114 = vector.extract_strided_slice %113 {offsets = [0, 0], sizes = [32, 256], strides = [1, 1]} : vector<64x256xf32> to vector<32x256xf32>
    %115 = vector.extract_strided_slice %113 {offsets = [32, 0], sizes = [32, 256], strides = [1, 1]} : vector<64x256xf32> to vector<32x256xf32>
    %cst_57 = arith.constant 5.000000e-01 : f32
    %116 = vector.broadcast %cst_57 : f32 to vector<32x256xf32>
    %117 = arith.mulf %116, %115 : vector<32x256xf32>
    %118 = math.exp %117 : vector<32x256xf32>
    %c0_58 = arith.constant 0 : index
    %c64 = arith.constant 64 : index
    %c0_59 = arith.constant 0 : index
    %119 = vector.load %arg6[%c0_58, %c64, %c0_59] : memref<1x96x256xf32, #tpu.memory_space<vmem>>, vector<1x32x256xf32>
    %120 = vector.shape_cast %119 : vector<1x32x256xf32> to vector<32x256xf32>
    %121 = arith.mulf %120, %118 : vector<32x256xf32>
    %122 = arith.addf %121, %114 : vector<32x256xf32>
    %c0_60 = arith.constant 0 : index
    %c0_61 = arith.constant 0 : index
    %c0_62 = arith.constant 0 : index
    %123 = vector.load %arg11[%c0_60, %c0_61, %c0_62] : memref<1x32x256xf32, #tpu.memory_space<vmem>>, vector<1x32x256xf32>
    %124 = vector.shape_cast %123 : vector<1x32x256xf32> to vector<32x256xf32>
    %125 = vector.shape_cast %122 : vector<32x256xf32> to vector<1x32x256xf32>
    tpu.vector_store %arg11[%c0_60, %c0_61, %c0_62], %125 {strides = array<i32>} : memref<1x32x256xf32, #tpu.memory_space<vmem>>, vector<1x32x256xf32>,
    %cst_63 = arith.constant 0.000000e+00 : f32
    %126 = vector.broadcast %cst_63 : f32 to vector<32x256xf32>
    %127 = arith.subf %126, %122 : vector<32x256xf32>
    %128 = math.exp %127 : vector<32x256xf32>
    %cst_64 = arith.constant 1.000000e+00 : f32
    %129 = vector.broadcast %cst_64 : f32 to vector<32x256xf32>
    %130 = arith.addf %129, %128 : vector<32x256xf32>
    %cst_65 = arith.constant 1.000000e+00 : f32
    %131 = vector.broadcast %cst_65 : f32 to vector<32x256xf32>
    %132 = arith.divf %131, %130 : vector<32x256xf32>
    %133 = math.log %132 : vector<32x256xf32>
    %cst_66 = arith.constant -1.000000e+02 : f32
    %134 = vector.broadcast %cst_66 : f32 to vector<32x256xf32>
    %135 = arith.maximumf %133, %134 : vector<32x256xf32>
    %136 = arith.subf %133, %122 : vector<32x256xf32>
    %cst_67 = arith.constant -1.000000e+02 : f32
    %137 = vector.broadcast %cst_67 : f32 to vector<32x256xf32>
    %138 = arith.maximumf %136, %137 : vector<32x256xf32>
    %139 = arith.mulf %118, %118 : vector<32x256xf32>
    %140 = arith.mulf %139, %139 : vector<32x256xf32>
    %cst_68 = arith.constant -2.000000e+00 : f32
    %141 = vector.broadcast %cst_68 : f32 to vector<32x256xf32>
    %142 = arith.mulf %141, %115 : vector<32x256xf32>
    %143 = math.exp %142 : vector<32x256xf32>
    %144 = arith.mulf %84, %39 : vector<32x256xf32>
    %cst_69 = arith.constant 1.000000e+00 : f32
    %145 = vector.broadcast %cst_69 : f32 to vector<32x256xf32>
    %146 = arith.subf %145, %84 : vector<32x256xf32>
    %147 = arith.mulf %146, %42 : vector<32x256xf32>
    %148 = arith.addf %144, %147 : vector<32x256xf32>
    %cst_70 = arith.constant 0.000000e+00 : f32
    %149 = vector.broadcast %cst_70 : f32 to vector<32x256xf32>
    %150 = arith.subf %149, %148 : vector<32x256xf32>
    %151 = arith.mulf %36, %87 : vector<32x256xf32>
    %cst_71 = arith.constant 1.000000e+00 : f32
    %152 = vector.broadcast %cst_71 : f32 to vector<32x256xf32>
    %153 = arith.subf %152, %36 : vector<32x256xf32>
    %154 = arith.mulf %153, %90 : vector<32x256xf32>
    %155 = arith.addf %151, %154 : vector<32x256xf32>
    %cst_72 = arith.constant 0.000000e+00 : f32
    %156 = vector.broadcast %cst_72 : f32 to vector<32x256xf32>
    %157 = arith.subf %156, %155 : vector<32x256xf32>
    %158 = arith.addf %150, %157 : vector<32x256xf32>
    %159 = arith.mulf %132, %39 : vector<32x256xf32>
    %cst_73 = arith.constant 1.000000e+00 : f32
    %160 = vector.broadcast %cst_73 : f32 to vector<32x256xf32>
    %161 = arith.subf %160, %132 : vector<32x256xf32>
    %162 = arith.mulf %161, %42 : vector<32x256xf32>
    %163 = arith.addf %159, %162 : vector<32x256xf32>
    %cst_74 = arith.constant 0.000000e+00 : f32
    %164 = vector.broadcast %cst_74 : f32 to vector<32x256xf32>
    %165 = arith.subf %164, %163 : vector<32x256xf32>
    %166 = arith.addf %158, %165 : vector<32x256xf32>
    %167 = arith.mulf %36, %135 : vector<32x256xf32>
    %cst_75 = arith.constant 1.000000e+00 : f32
    %168 = vector.broadcast %cst_75 : f32 to vector<32x256xf32>
    %169 = arith.subf %168, %36 : vector<32x256xf32>
    %170 = arith.mulf %169, %138 : vector<32x256xf32>
    %171 = arith.addf %167, %170 : vector<32x256xf32>
    %cst_76 = arith.constant 0.000000e+00 : f32
    %172 = vector.broadcast %cst_76 : f32 to vector<32x256xf32>
    %173 = arith.subf %172, %171 : vector<32x256xf32>
    %174 = arith.addf %166, %173 : vector<32x256xf32>
    %175 = arith.mulf %132, %87 : vector<32x256xf32>
    %cst_77 = arith.constant 1.000000e+00 : f32
    %176 = vector.broadcast %cst_77 : f32 to vector<32x256xf32>
    %177 = arith.subf %176, %132 : vector<32x256xf32>
    %178 = arith.mulf %177, %90 : vector<32x256xf32>
    %179 = arith.addf %175, %178 : vector<32x256xf32>
    %cst_78 = arith.constant 0.000000e+00 : f32
    %180 = vector.broadcast %cst_78 : f32 to vector<32x256xf32>
    %181 = arith.subf %180, %179 : vector<32x256xf32>
    %182 = arith.addf %174, %181 : vector<32x256xf32>
    %183 = arith.mulf %84, %135 : vector<32x256xf32>
    %cst_79 = arith.constant 1.000000e+00 : f32
    %184 = vector.broadcast %cst_79 : f32 to vector<32x256xf32>
    %185 = arith.subf %184, %84 : vector<32x256xf32>
    %186 = arith.mulf %185, %138 : vector<32x256xf32>
    %187 = arith.addf %183, %186 : vector<32x256xf32>
    %cst_80 = arith.constant 0.000000e+00 : f32
    %188 = vector.broadcast %cst_80 : f32 to vector<32x256xf32>
    %189 = arith.subf %188, %187 : vector<32x256xf32>
    %190 = arith.addf %182, %189 : vector<32x256xf32>
    %191 = arith.subf %18, %66 : vector<32x256xf32>
    %192 = arith.subf %67, %19 : vector<32x256xf32>
    %193 = arith.mulf %191, %191 : vector<32x256xf32>
    %194 = arith.addf %44, %193 : vector<32x256xf32>
    %cst_81 = arith.constant 5.000000e-01 : f32
    %195 = vector.broadcast %cst_81 : f32 to vector<32x256xf32>
    %196 = arith.mulf %195, %194 : vector<32x256xf32>
    %197 = arith.mulf %196, %95 : vector<32x256xf32>
    %198 = arith.addf %192, %197 : vector<32x256xf32>
    %cst_82 = arith.constant 5.000000e-01 : f32
    %199 = vector.broadcast %cst_82 : f32 to vector<32x256xf32>
    %200 = arith.subf %198, %199 : vector<32x256xf32>
    %201 = arith.subf %66, %18 : vector<32x256xf32>
    %202 = arith.subf %19, %67 : vector<32x256xf32>
    %203 = arith.mulf %201, %201 : vector<32x256xf32>
    %204 = arith.addf %92, %203 : vector<32x256xf32>
    %cst_83 = arith.constant 5.000000e-01 : f32
    %205 = vector.broadcast %cst_83 : f32 to vector<32x256xf32>
    %206 = arith.mulf %205, %204 : vector<32x256xf32>
    %207 = arith.mulf %206, %47 : vector<32x256xf32>
    %208 = arith.addf %202, %207 : vector<32x256xf32>
    %cst_84 = arith.constant 5.000000e-01 : f32
    %209 = vector.broadcast %cst_84 : f32 to vector<32x256xf32>
    %210 = arith.subf %208, %209 : vector<32x256xf32>
    %211 = arith.addf %200, %210 : vector<32x256xf32>
    %212 = arith.subf %114, %66 : vector<32x256xf32>
    %213 = arith.subf %67, %115 : vector<32x256xf32>
    %214 = arith.mulf %212, %212 : vector<32x256xf32>
    %215 = arith.addf %140, %214 : vector<32x256xf32>
    %cst_85 = arith.constant 5.000000e-01 : f32
    %216 = vector.broadcast %cst_85 : f32 to vector<32x256xf32>
    %217 = arith.mulf %216, %215 : vector<32x256xf32>
    %218 = arith.mulf %217, %95 : vector<32x256xf32>
    %219 = arith.addf %213, %218 : vector<32x256xf32>
    %cst_86 = arith.constant 5.000000e-01 : f32
    %220 = vector.broadcast %cst_86 : f32 to vector<32x256xf32>
    %221 = arith.subf %219, %220 : vector<32x256xf32>
    %222 = arith.addf %211, %221 : vector<32x256xf32>
    %223 = arith.subf %66, %114 : vector<32x256xf32>
    %224 = arith.subf %115, %67 : vector<32x256xf32>
    %225 = arith.mulf %223, %223 : vector<32x256xf32>
    %226 = arith.addf %92, %225 : vector<32x256xf32>
    %cst_87 = arith.constant 5.000000e-01 : f32
    %227 = vector.broadcast %cst_87 : f32 to vector<32x256xf32>
    %228 = arith.mulf %227, %226 : vector<32x256xf32>
    %229 = arith.mulf %228, %143 : vector<32x256xf32>
    %230 = arith.addf %224, %229 : vector<32x256xf32>
    %cst_88 = arith.constant 5.000000e-01 : f32
    %231 = vector.broadcast %cst_88 : f32 to vector<32x256xf32>
    %232 = arith.subf %230, %231 : vector<32x256xf32>
    %233 = arith.addf %222, %232 : vector<32x256xf32>
    %234 = arith.subf %18, %114 : vector<32x256xf32>
    %235 = arith.subf %115, %19 : vector<32x256xf32>
    %236 = arith.mulf %234, %234 : vector<32x256xf32>
    %237 = arith.addf %44, %236 : vector<32x256xf32>
    %cst_89 = arith.constant 5.000000e-01 : f32
    %238 = vector.broadcast %cst_89 : f32 to vector<32x256xf32>
    %239 = arith.mulf %238, %237 : vector<32x256xf32>
    %240 = arith.mulf %239, %143 : vector<32x256xf32>
    %241 = arith.addf %235, %240 : vector<32x256xf32>
    %cst_90 = arith.constant 5.000000e-01 : f32
    %242 = vector.broadcast %cst_90 : f32 to vector<32x256xf32>
    %243 = arith.subf %241, %242 : vector<32x256xf32>
    %244 = arith.addf %233, %243 : vector<32x256xf32>
    %245 = arith.subf %114, %18 : vector<32x256xf32>
    %246 = arith.subf %19, %115 : vector<32x256xf32>
    %247 = arith.mulf %245, %245 : vector<32x256xf32>
    %248 = arith.addf %140, %247 : vector<32x256xf32>
    %cst_91 = arith.constant 5.000000e-01 : f32
    %249 = vector.broadcast %cst_91 : f32 to vector<32x256xf32>
    %250 = arith.mulf %249, %248 : vector<32x256xf32>
    %251 = arith.mulf %250, %47 : vector<32x256xf32>
    %252 = arith.addf %246, %251 : vector<32x256xf32>
    %cst_92 = arith.constant 5.000000e-01 : f32
    %253 = vector.broadcast %cst_92 : f32 to vector<32x256xf32>
    %254 = arith.subf %252, %253 : vector<32x256xf32>
    %255 = arith.addf %244, %254 : vector<32x256xf32>
    %256 = vector.shape_cast %190 : vector<32x256xf32> to vector<1x32x256xf32>
    %cst_93 = arith.constant dense<0.000000e+00> : vector<1xf32>
    %257 = vector.multi_reduction <add>, %256, %cst_93 [1, 2] : vector<1x32x256xf32> to vector<1xf32>
    %258 = vector.shape_cast %257 : vector<1xf32> to vector<1x1x1xf32>
    %259 = vector.extract %258[0, 0, 0] : f32 from vector<1x1x1xf32>
    %260 = vector.shape_cast %255 : vector<32x256xf32> to vector<1x32x256xf32>
    %cst_94 = arith.constant dense<0.000000e+00> : vector<1xf32>
    %261 = vector.multi_reduction <add>, %260, %cst_94 [1, 2] : vector<1x32x256xf32> to vector<1xf32>
    %262 = vector.shape_cast %261 : vector<1xf32> to vector<1x1x1xf32>
    %263 = vector.extract %262[0, 0, 0] : f32 from vector<1x1x1xf32>
    %264 = tpu.iota {dimensions = array<i32: 0>} : vector<8x128xi32>
    %c4_i32 = arith.constant 4 : i32
    %265 = vector.broadcast %c4_i32 : i32 to vector<8x128xi32>
    %266 = arith.cmpi slt, %264, %265 : vector<8x128xi32>
    %267 = vector.broadcast %259 : f32 to vector<8x128xf32>
    %268 = vector.broadcast %263 : f32 to vector<8x128xf32>
    %269 = arith.select %266, %267, %268 : vector<8x128xi1>, vector<8x128xf32>
    %c0_95 = arith.constant 0 : index
    %c0_96 = arith.constant 0 : index
    %c0_97 = arith.constant 0 : index
    %c0_98 = arith.constant 0 : index
    %270 = vector.load %arg12[%c0_95, %c0_96, %c0_97, %c0_98] : memref<1x1x8x128xf32, #tpu.memory_space<vmem>>, vector<1x1x8x128xf32>
    %271 = vector.shape_cast %270 : vector<1x1x8x128xf32> to vector<8x128xf32>
    %272 = vector.shape_cast %269 : vector<8x128xf32> to vector<1x1x8x128xf32>
    tpu.vector_store %arg12[%c0_95, %c0_96, %c0_97, %c0_98], %272 {strides = array<i32>} : memref<1x1x8x128xf32, #tpu.memory_space<vmem>>, vector<1x1x8x128xf32>,
    return
  }
  func.func @transform_0(%arg0: i32, %arg1: i32, %arg2: memref<1xi32, #tpu.memory_space<smem>>) -> (i32, i32, i32) {
    %c0_i32 = arith.constant 0 : i32
    %c0_i32_0 = arith.constant 0 : i32
    return %arg0, %c0_i32, %arg1 : i32, i32, i32
  }
  func.func @transform_1(%arg0: i32, %arg1: i32, %arg2: memref<1xi32, #tpu.memory_space<smem>>) -> (i32, i32, i32) {
    %c0_i32 = arith.constant 0 : i32
    %c0_i32_0 = arith.constant 0 : i32
    return %arg0, %c0_i32, %arg1 : i32, i32, i32
  }
  func.func @transform_2(%arg0: i32, %arg1: i32, %arg2: memref<1xi32, #tpu.memory_space<smem>>) -> (i32, i32, i32) {
    %c0_i32 = arith.constant 0 : i32
    %c0_i32_0 = arith.constant 0 : i32
    return %arg0, %c0_i32, %arg1 : i32, i32, i32
  }
  func.func @transform_3(%arg0: i32, %arg1: i32, %arg2: memref<1xi32, #tpu.memory_space<smem>>) -> (i32, i32, i32) {
    %c0_i32 = arith.constant 0 : i32
    %c0_i32_0 = arith.constant 0 : i32
    return %arg0, %c0_i32, %arg1 : i32, i32, i32
  }
  func.func @transform_4(%arg0: i32, %arg1: i32, %arg2: memref<1xi32, #tpu.memory_space<smem>>) -> (i32, i32, i32) {
    %c0_i32 = arith.constant 0 : i32
    %c0_i32_0 = arith.constant 0 : i32
    %c0_i32_1 = arith.constant 0 : i32
    %c0_i32_2 = arith.constant 0 : i32
    return %c0_i32, %c0_i32_0, %c0_i32_1 : i32, i32, i32
  }
  func.func @transform_5(%arg0: i32, %arg1: i32, %arg2: memref<1xi32, #tpu.memory_space<smem>>) -> (i32, i32, i32) {
    %c0_i32 = arith.constant 0 : i32
    %c0_i32_0 = arith.constant 0 : i32
    %c0_i32_1 = arith.constant 0 : i32
    %c0_i32_2 = arith.constant 0 : i32
    return %c0_i32, %c0_i32_0, %c0_i32_1 : i32, i32, i32
  }
  func.func @transform_6(%arg0: i32, %arg1: i32, %arg2: memref<1xi32, #tpu.memory_space<smem>>) -> (i32, i32, i32) {
    %c0_i32 = arith.constant 0 : i32
    %c0_i32_0 = arith.constant 0 : i32
    return %arg0, %c0_i32, %arg1 : i32, i32, i32
  }
  func.func @transform_7(%arg0: i32, %arg1: i32, %arg2: memref<1xi32, #tpu.memory_space<smem>>) -> (i32, i32, i32) {
    %c0_i32 = arith.constant 0 : i32
    %c0_i32_0 = arith.constant 0 : i32
    return %arg0, %c0_i32, %arg1 : i32, i32, i32
  }
  func.func @transform_8(%arg0: i32, %arg1: i32, %arg2: memref<1xi32, #tpu.memory_space<smem>>) -> (i32, i32, i32) {
    %c0_i32 = arith.constant 0 : i32
    %c0_i32_0 = arith.constant 0 : i32
    return %arg0, %c0_i32, %arg1 : i32, i32, i32
  }
  func.func @transform_9(%arg0: i32, %arg1: i32, %arg2: memref<1xi32, #tpu.memory_space<smem>>) -> (i32, i32, i32, i32) {
    %c0_i32 = arith.constant 0 : i32
    %c0_i32_0 = arith.constant 0 : i32
    %c0_i32_1 = arith.constant 0 : i32
    return %arg0, %arg1, %c0_i32, %c0_i32_0 : i32, i32, i32, i32
  }
}

</mosaic_0001>

<llo_original>
// kernel: tpu_custom_call.1
$region0: #{tpu_custom_call.1}
  #allocation0 [shape = 'u32[]', space=smem, size = 0x4, offset = 0x4, fixed_abs, tag = 'smem constant byte address 0x4 - core index']
  #allocation1 [shape = 'u32[144,128]{1,0:T(1,128)}', space=vmem, size = 0x12000, scoped, tag = 'internal scratch']
  #allocation2 [shape = 's32[1]{0}', space=sflag, size = 0x4, scoped, tag = 'scoped memory for tpu_custom_call.1']
  #allocation3 [shape = 's32[1]{0:T(128)S(6)}', space=smem, size = 0x200, scoped, tag = 'prefetched SMEM operand 0']
  %s0 = inlined_call_operand.<no memory space> [shape: s32[1], index: 0, kind: input, shape index: {}]
  %s1 = inlined_call_operand.vmem [shape: f32[2,4,256], index: 1, kind: input, shape index: {}]
  %s2 = inlined_call_operand.hbm [shape: f32[2,4,256], index: 2, kind: input, shape index: {}]
  %s3 = inlined_call_operand.hbm [shape: f32[2,4,256], index: 3, kind: input, shape index: {}]
  %s4 = inlined_call_operand.vmem [shape: f32[2,96,256], index: 4, kind: input, shape index: {}]
  %s5 = inlined_call_operand.vmem [shape: f32[3,64,4], index: 5, kind: input, shape index: {}]
  %s6 = inlined_call_operand.vmem [shape: f32[3,64,1], index: 6, kind: input, shape index: {}]
  %s7 = inlined_call_operand.hbm [shape: f32[2,32,256], index: 7, kind: output, shape index: {0}]
  %s8 = inlined_call_operand.hbm [shape: f32[2,32,256], index: 8, kind: output, shape index: {1}]
  %s9 = inlined_call_operand.hbm [shape: f32[2,32,256], index: 9, kind: output, shape index: {2}]
  %s10 = inlined_call_operand.hbm [shape: f32[2,1,8,128], index: 10, kind: output, shape index: {3}]
  %11 = xla_tuple %s7, %s8, %s9, %s10
  %s12 = sld [smem:[#allocation0]]
  $region89: #{tpu_custom_call.1} parent=0
    _
  %s14 = ssub.s32 1, %s12
  %s15 = scalar_select 0, %s14, %s12
  %16 = sst [smem:[#allocation3]] %s0
  $region1: #{tpu_custom_call.1} parent=0
    #allocation4 [shape = 'u8[8192]{0}', space=vmem, size = 0x2000, scoped, tag = 'input window, operand 2']
    #allocation5 [shape = 's32[2]{0}', space=sflag, size = 0x8, scoped, tag = 'scoped memory for tpu_custom_call.1']
    #allocation6 [shape = 's32[2]{0}', space=sflag, size = 0x8, scoped, tag = 'scoped memory for tpu_custom_call.1']
    #allocation7 [shape = 'u8[8192]{0}', space=vmem, size = 0x2000, scoped, tag = 'input window, operand 3']
    #allocation8 [shape = 's32[2]{0}', space=sflag, size = 0x8, scoped, tag = 'scoped memory for tpu_custom_call.1']
    #allocation9 [shape = 'u8[65536]{0}', space=vmem, size = 0x10000, scoped, tag = 'output window, operand 0']
    #allocation10 [shape = 'u8[65536]{0}', space=vmem, size = 0x10000, scoped, tag = 'output window, operand 1']
    #allocation11 [shape = 's32[2]{0}', space=sflag, size = 0x8, scoped, tag = 'scoped memory for tpu_custom_call.1']
    #allocation12 [shape = 'u8[65536]{0}', space=vmem, size = 0x10000, scoped, tag = 'output window, operand 2']
    #allocation13 [shape = 'u8[8192]{0}', space=vmem, size = 0x2000, scoped, tag = 'output window, operand 3']
    #allocation14 [shape = 's32[2]{0}', space=sflag, size = 0x8, scoped, tag = 'scoped memory for tpu_custom_call.1']
    %17 = vsyncpa [#allocation5], 0
    %s18 = scalar_lea.sflag [#allocation5], 1
    %19 = vsyncpa %s18, 0
    %20 = vsyncpa [#allocation8], 0
    %s21 = scalar_lea.sflag [#allocation8], 1
    %22 = vsyncpa %s21, 0
    %23 = vsyncpa [#allocation6], 0
    %s24 = scalar_lea.sflag [#allocation6], 1
    %25 = vsyncpa %s24, 0
    %26 = vsyncpa [#allocation11], 0
    %s27 = scalar_lea.sflag [#allocation11], 1
    %28 = vsyncpa %s27, 0
    %29 = vsyncpa [#allocation14], 0
    %s30 = scalar_lea.sflag [#allocation14], 1
    %31 = vsyncpa %s30, 0
    loop: start=0, step=1, limit=4
    $region2: #{tpu_custom_call.1} parent=1 // loop_pre_header
      _
    $region3: #{tpu_custom_call.1} parent=1 // loop_header
      %s33 = sphi 0, %s37
      %p34 = scmp.ge.s32.totalorder %s33, 4
      %s40 = sphi 0, %s52
      %s41 = sphi 0, %s48
      %s42 = sphi 0, %s40
      %s43 = sphi 0, %s41
      %s44 = sphi 0, %s42
      %s45 = sphi 0, %s43
      %s57 = sphi 0, %s59
      %s60 = sphi 0, %s57
      %s61 = sphi 0, %s60
      %s77 = sphi 0, %s61
      %s85 = sphi 0, %s87
      %s88 = sphi 0, %s85
      %s89 = sphi 0, %s88
      %s105 = sphi 0, %s89
      %s113 = sphi 0, %s115
      %s116 = sphi 0, %s113
      %s117 = sphi 0, %s116
      %s133 = sphi 0, %s117
      %s141 = sphi 0, %s143
      %s144 = sphi 0, %s141
      %s145 = sphi 0, %s144
      %s161 = sphi 0, %s145
      %s165 = sphi 0, %s165
      %s167 = sphi 0, %s165
      %s168 = sphi 0, %s167
      %s182 = sphi 0, %s168
      %s186 = sphi 0, %s186
      %s188 = sphi 0, %s186
      %s189 = sphi 0, %s188
      %s203 = sphi 0, %s189
      %s211 = sphi 0, %s213
      %s214 = sphi 0, %s211
      %s215 = sphi 0, %s214
      %s231 = sphi 0, %s215
      %s239 = sphi 0, %s241
      %s242 = sphi 0, %s239
      %s243 = sphi 0, %s242
      %s259 = sphi 0, %s243
      %s267 = sphi 0, %s269
      %s270 = sphi 0, %s267
      %s271 = sphi 0, %s270
      %s287 = sphi 0, %s271
      %s295 = sphi 0, %s297
      %s298 = sphi 0, %s295
      %s299 = sphi 0, %s298
      %s315 = sphi 0, %s299
    $region4: #{tpu_custom_call.1} parent=1 // loop_header_branch
      %36 = sbr.rel (%p34) target = $region8
    $region5: #{tpu_custom_call.1} parent=1 // loop_body
      %s38 = ssub.s32 %s33, 1
      %s39 = ssub.s32 %s33, 2
      %s46 = sadd.s32 1, %s41
      %p47 = scmp.ge.s32.totalorder %s46, 1
      %s48 = scalar_select %p47, 0, %s46
      %s49 = sadd.s32 1, %s40
      %s50 = scalar_select %p47, %s49, %s40
      %p51 = scmp.ge.s32.totalorder %s50, 2
      %s52 = scalar_select %p51, 0, %s50
      %s53 = ssub.s32 %s40, %s52
      %s54 = ssub.s32 %s41, %s48
      %s55 = sor.u32 %s53, %s54
      %p56 = scmp.eq.s32.totalorder %s55, 0
      %s58 = sadd.s32 %s57, 1
      %s59 = scalar_select %p56, %s57, %s58
      %p62 = pneg %p56
      %p63 = scmp.eq.s32.totalorder %s33, 1
      %p64 = por %p62, %p63
      %p65 = scmp.ne.s32.totalorder %s57, %s60
      %p66 = scmp.eq.s32.totalorder %s33, 0
      %p67 = por %p65, %p66
      %p68 = scmp.ne.s32.totalorder %s57, %s60
      %p69 = scmp.eq.s32.totalorder %s38, 1
      %p70 = por %p68, %p69
      %p71 = scmp.ne.s32.totalorder %s60, %s61
      %p72 = scmp.eq.s32.totalorder %s38, 0
      %p73 = por %p71, %p72
      %p74 = scmp.ne.s32.totalorder %s60, %s61
      %p75 = scmp.eq.s32.totalorder %s39, 1
      %p76 = por %p74, %p75
      %p78 = scmp.ne.s32.totalorder %s61, %s77
      %p79 = scmp.eq.s32.totalorder %s39, 0
      %p80 = por %p78, %p79
      %s81 = ssub.s32 %s40, %s52
      %s82 = ssub.s32 %s41, %s48
      %s83 = sor.u32 %s81, %s82
      %p84 = scmp.eq.s32.totalorder %s83, 0
      %s86 = sadd.s32 %s85, 1
      %s87 = scalar_select %p84, %s85, %s86
      %p90 = pneg %p84
      %p91 = scmp.eq.s32.totalorder %s33, 1
      %p92 = por %p90, %p91
      %p93 = scmp.ne.s32.totalorder %s85, %s88
      %p94 = scmp.eq.s32.totalorder %s33, 0
      %p95 = por %p93, %p94
      %p96 = scmp.ne.s32.totalorder %s85, %s88
      %p97 = scmp.eq.s32.totalorder %s38, 1
      %p98 = por %p96, %p97
      %p99 = scmp.ne.s32.totalorder %s88, %s89
      %p100 = scmp.eq.s32.totalorder %s38, 0
      %p101 = por %p99, %p100
      %p102 = scmp.ne.s32.totalorder %s88, %s89
      %p103 = scmp.eq.s32.totalorder %s39, 1
      %p104 = por %p102, %p103
      %p106 = scmp.ne.s32.totalorder %s89, %s105
      %p107 = scmp.eq.s32.totalorder %s39, 0
      %p108 = por %p106, %p107
      %s109 = ssub.s32 %s40, %s52
      %s110 = ssub.s32 %s41, %s48
      %s111 = sor.u32 %s109, %s110
      %p112 = scmp.eq.s32.totalorder %s111, 0
      %s114 = sadd.s32 %s113, 1
      %s115 = scalar_select %p112, %s113, %s114
      %p118 = pneg %p112
      %p119 = scmp.eq.s32.totalorder %s33, 1
      %p120 = por %p118, %p119
      %p121 = scmp.ne.s32.totalorder %s113, %s116
      %p122 = scmp.eq.s32.totalorder %s33, 0
      %p123 = por %p121, %p122
      %p124 = scmp.ne.s32.totalorder %s113, %s116
      %p125 = scmp.eq.s32.totalorder %s38, 1
      %p126 = por %p124, %p125
      %p127 = scmp.ne.s32.totalorder %s116, %s117
      %p128 = scmp.eq.s32.totalorder %s38, 0
      %p129 = por %p127, %p128
      %p130 = scmp.ne.s32.totalorder %s116, %s117
      %p131 = scmp.eq.s32.totalorder %s39, 1
      %p132 = por %p130, %p131
      %p134 = scmp.ne.s32.totalorder %s117, %s133
      %p135 = scmp.eq.s32.totalorder %s39, 0
      %p136 = por %p134, %p135
      %s137 = ssub.s32 %s40, %s52
      %s138 = ssub.s32 %s41, %s48
      %s139 = sor.u32 %s137, %s138
      %p140 = scmp.eq.s32.totalorder %s139, 0
      %s142 = sadd.s32 %s141, 1
      %s143 = scalar_select %p140, %s141, %s142
      %p146 = pneg %p140
      %p147 = scmp.eq.s32.totalorder %s33, 1
      %p148 = por %p146, %p147
      %p149 = scmp.ne.s32.totalorder %s141, %s144
      %p150 = scmp.eq.s32.totalorder %s33, 0
      %p151 = por %p149, %p150
      %p152 = scmp.ne.s32.totalorder %s141, %s144
      %p153 = scmp.eq.s32.totalorder %s38, 1
      %p154 = por %p152, %p153
      %p155 = scmp.ne.s32.totalorder %s144, %s145
      %p156 = scmp.eq.s32.totalorder %s38, 0
      %p157 = por %p155, %p156
      %p158 = scmp.ne.s32.totalorder %s144, %s145
      %p159 = scmp.eq.s32.totalorder %s39, 1
      %p160 = por %p158, %p159
      %p162 = scmp.ne.s32.totalorder %s145, %s161
      %p163 = scmp.eq.s32.totalorder %s39, 0
      %p164 = por %p162, %p163
      %s166 = sadd.s32 %s165, 1
      %p169 = scmp.eq.s32.totalorder %s33, 1
      %p170 = scmp.ne.s32.totalorder %s165, %s167
      %p171 = scmp.eq.s32.totalorder %s33, 0
      %p172 = por %p170, %p171
      %p173 = scmp.ne.s32.totalorder %s165, %s167
      %p174 = scmp.eq.s32.totalorder %s38, 1
      %p175 = por %p173, %p174
      %p176 = scmp.ne.s32.totalorder %s167, %s168
      %p177 = scmp.eq.s32.totalorder %s38, 0
      %p178 = por %p176, %p177
      %p179 = scmp.ne.s32.totalorder %s167, %s168
      %p180 = scmp.eq.s32.totalorder %s39, 1
      %p181 = por %p179, %p180
      %p183 = scmp.ne.s32.totalorder %s168, %s182
      %p184 = scmp.eq.s32.totalorder %s39, 0
      %p185 = por %p183, %p184
      %s187 = sadd.s32 %s186, 1
      %p190 = scmp.eq.s32.totalorder %s33, 1
      %p191 = scmp.ne.s32.totalorder %s186, %s188
      %p192 = scmp.eq.s32.totalorder %s33, 0
      %p193 = por %p191, %p192
      %p194 = scmp.ne.s32.totalorder %s186, %s188
      %p195 = scmp.eq.s32.totalorder %s38, 1
      %p196 = por %p194, %p195
      %p197 = scmp.ne.s32.totalorder %s188, %s189
      %p198 = scmp.eq.s32.totalorder %s38, 0
      %p199 = por %p197, %p198
      %p200 = scmp.ne.s32.totalorder %s188, %s189
      %p201 = scmp.eq.s32.totalorder %s39, 1
      %p202 = por %p200, %p201
      %p204 = scmp.ne.s32.totalorder %s189, %s203
      %p205 = scmp.eq.s32.totalorder %s39, 0
      %p206 = por %p204, %p205
      %s207 = ssub.s32 %s40, %s52
      %s208 = ssub.s32 %s41, %s48
      %s209 = sor.u32 %s207, %s208
      %p210 = scmp.eq.s32.totalorder %s209, 0
      %s212 = sadd.s32 %s211, 1
      %s213 = scalar_select %p210, %s211, %s212
      %p216 = pneg %p210
      %p217 = scmp.eq.s32.totalorder %s33, 1
      %p218 = por %p216, %p217
      %p219 = scmp.ne.s32.totalorder %s211, %s214
      %p220 = scmp.eq.s32.totalorder %s33, 0
      %p221 = por %p219, %p220
      %p222 = scmp.ne.s32.totalorder %s211, %s214
      %p223 = scmp.eq.s32.totalorder %s38, 1
      %p224 = por %p222, %p223
      %p225 = scmp.ne.s32.totalorder %s214, %s215
      %p226 = scmp.eq.s32.totalorder %s38, 0
      %p227 = por %p225, %p226
      %p228 = scmp.ne.s32.totalorder %s214, %s215
      %p229 = scmp.eq.s32.totalorder %s39, 1
      %p230 = por %p228, %p229
      %p232 = scmp.ne.s32.totalorder %s215, %s231
      %p233 = scmp.eq.s32.totalorder %s39, 0
      %p234 = por %p232, %p233
      %s235 = ssub.s32 %s40, %s52
      %s236 = ssub.s32 %s41, %s48
      %s237 = sor.u32 %s235, %s236
      %p238 = scmp.eq.s32.totalorder %s237, 0
      %s240 = sadd.s32 %s239, 1
      %s241 = scalar_select %p238, %s239, %s240
      %p244 = pneg %p238
      %p245 = scmp.eq.s32.totalorder %s33, 1
      %p246 = por %p244, %p245
      %p247 = scmp.ne.s32.totalorder %s239, %s242
      %p248 = scmp.eq.s32.totalorder %s33, 0
      %p249 = por %p247, %p248
      %p250 = scmp.ne.s32.totalorder %s239, %s242
      %p251 = scmp.eq.s32.totalorder %s38, 1
      %p252 = por %p250, %p251
      %p253 = scmp.ne.s32.totalorder %s242, %s243
      %p254 = scmp.eq.s32.totalorder %s38, 0
      %p255 = por %p253, %p254
      %p256 = scmp.ne.s32.totalorder %s242, %s243
      %p257 = scmp.eq.s32.totalorder %s39, 1
      %p258 = por %p256, %p257
      %p260 = scmp.ne.s32.totalorder %s243, %s259
      %p261 = scmp.eq.s32.totalorder %s39, 0
      %p262 = por %p260, %p261
      %s263 = ssub.s32 %s40, %s52
      %s264 = ssub.s32 %s41, %s48
      %s265 = sor.u32 %s263, %s264
      %p266 = scmp.eq.s32.totalorder %s265, 0
      %s268 = sadd.s32 %s267, 1
      %s269 = scalar_select %p266, %s267, %s268
      %p272 = pneg %p266
      %p273 = scmp.eq.s32.totalorder %s33, 1
      %p274 = por %p272, %p273
      %p275 = scmp.ne.s32.totalorder %s267, %s270
      %p276 = scmp.eq.s32.totalorder %s33, 0
      %p277 = por %p275, %p276
      %p278 = scmp.ne.s32.totalorder %s267, %s270
      %p279 = scmp.eq.s32.totalorder %s38, 1
      %p280 = por %p278, %p279
      %p281 = scmp.ne.s32.totalorder %s270, %s271
      %p282 = scmp.eq.s32.totalorder %s38, 0
      %p283 = por %p281, %p282
      %p284 = scmp.ne.s32.totalorder %s270, %s271
      %p285 = scmp.eq.s32.totalorder %s39, 1
      %p286 = por %p284, %p285
      %p288 = scmp.ne.s32.totalorder %s271, %s287
      %p289 = scmp.eq.s32.totalorder %s39, 0
      %p290 = por %p288, %p289
      %s291 = ssub.s32 %s40, %s52
      %s292 = ssub.s32 %s41, %s48
      %s293 = sor.u32 %s291, %s292
      %p294 = scmp.eq.s32.totalorder %s293, 0
      %s296 = sadd.s32 %s295, 1
      %s297 = scalar_select %p294, %s295, %s296
      %p300 = pneg %p294
      %p301 = scmp.eq.s32.totalorder %s33, 1
      %p302 = por %p300, %p301
      %p303 = scmp.ne.s32.totalorder %s295, %s298
      %p304 = scmp.eq.s32.totalorder %s33, 0
      %p305 = por %p303, %p304
      %p306 = scmp.ne.s32.totalorder %s295, %s298
      %p307 = scmp.eq.s32.totalorder %s38, 1
      %p308 = por %p306, %p307
      %p309 = scmp.ne.s32.totalorder %s298, %s299
      %p310 = scmp.eq.s32.totalorder %s38, 0
      %p311 = por %p309, %p310
      %p312 = scmp.ne.s32.totalorder %s298, %s299
      %p313 = scmp.eq.s32.totalorder %s39, 1
      %p314 = por %p312, %p313
      %p316 = scmp.ne.s32.totalorder %s299, %s315
      %p317 = scmp.eq.s32.totalorder %s39, 0
      %p318 = por %p316, %p317
      %p319 = scmp.le.s32.totalorder 1, %s33
      %p320 = scmp.lt.s32.totalorder %s33, 3
      %p321 = pnand %p319, %p320
      %p322 = pneg %p321
      // Predicated region
      $region9: #{tpu_custom_call.1} parent=5 // pred_check
        _
      $region10: #{tpu_custom_call.1} parent=5 // pred_check_branch
        %324 = sbr.rel (%p321) target = $region12
      $region11: #{tpu_custom_call.1} parent=5 // pred_region
        %s325 = ssub.s32 %s33, 1
        // Predicated region
        $region13: #{tpu_custom_call.1} parent=11 // pred_check
          %p326 = pneg %p178
        $region14: #{tpu_custom_call.1} parent=11 // pred_check_branch
          %328 = sbr.rel (%p326) target = $region16
        $region15: #{tpu_custom_call.1} parent=11 // pred_region
          _
        $region16: #{tpu_custom_call.1} parent=11 // pred_fallthru
          _
        // Predicated region
        $region17: #{tpu_custom_call.1} parent=11 // pred_check
          %p329 = pneg %p199
        $region18: #{tpu_custom_call.1} parent=11 // pred_check_branch
          %331 = sbr.rel (%p329) target = $region20
        $region19: #{tpu_custom_call.1} parent=11 // pred_region
          _
        $region20: #{tpu_custom_call.1} parent=11 // pred_fallthru
          _
      $region12: #{tpu_custom_call.1} parent=5 // pred_fallthru
        _
      %p332 = scmp.lt.s32.totalorder %s33, 2
      // Predicated region
      $region21: #{tpu_custom_call.1} parent=5 // pred_check
        %p333 = pneg %p332
      $region22: #{tpu_custom_call.1} parent=5 // pred_check_branch
        %335 = sbr.rel (%p333) target = $region24
      $region23: #{tpu_custom_call.1} parent=5 // pred_region
        // Predicated region
        $region25: #{tpu_custom_call.1} parent=23 // pred_check
          %p336 = pneg %p67
        $region26: #{tpu_custom_call.1} parent=23 // pred_check_branch
          %338 = sbr.rel (%p336) target = $region28
        $region27: #{tpu_custom_call.1} parent=23 // pred_region
          %s339 = smul.u32 2, %s41
          %p340 = scmp.lt.s32.totalorder %s40, 1
          %s341 = scalar_select %p340, %s40, 1
          %p342 = scmp.lt.s32.totalorder %s339, 1
          %s343 = scalar_select %p342, %s339, 1
          %s344 = smul.addr %s341, 2
          %s345 = sadd.s32 %s343, %s344
          %s346 = smul.addr %s345, 4
          %s347 = scalar_lea.vmem %s1, %s346
          %s348 = smul.u32 2, %s41
        $region28: #{tpu_custom_call.1} parent=23 // pred_fallthru
          _
        // Predicated region
        $region29: #{tpu_custom_call.1} parent=23 // pred_check
          %p349 = pneg %p95
        $region30: #{tpu_custom_call.1} parent=23 // pred_check_branch
          %351 = sbr.rel (%p349) target = $region32
        $region31: #{tpu_custom_call.1} parent=23 // pred_region
          %s352 = sand.u32 %s85, 1
          %s353 = scalar_lea.sflag [#allocation5], %s352
          %s354 = sand.u32 %s85, 1
          %s355 = smul.addr %s354, 8
          %s356 = scalar_lea.vmem [#allocation4], %s355
          %s357 = smul.u32 2, %s41
          %s359 = ssub.s32 128, 128
          %360 = vsyncadd %s353, %s359
          %s361 = smul.addr %s40, 2
          %s362 = sadd.s32 %s357, %s361
          %s363 = smul.addr %s362, 64
          %s364 = scalar_lea.hbm %s2, %s363
          %s366 = sshll.u32 %s356, 4
          %s367 = int_to_ptr.vmem [resolvable:$true] %s366
          %369 = dma.hbm_to_vmem [thread:$0]  %s364, 128, %s367, %s353
        $region32: #{tpu_custom_call.1} parent=23 // pred_fallthru
          _
        // Predicated region
        $region33: #{tpu_custom_call.1} parent=23 // pred_check
          %p370 = pneg %p123
        $region34: #{tpu_custom_call.1} parent=23 // pred_check_branch
          %372 = sbr.rel (%p370) target = $region36
        $region35: #{tpu_custom_call.1} parent=23 // pred_region
          %s373 = sand.u32 %s113, 1
          %s374 = scalar_lea.sflag [#allocation8], %s373
          %s375 = sand.u32 %s113, 1
          %s376 = smul.addr %s375, 8
          %s377 = scalar_lea.vmem [#allocation7], %s376
          %s378 = smul.u32 2, %s41
          %s380 = ssub.s32 128, 128
          %381 = vsyncadd %s374, %s380
          %s382 = smul.addr %s40, 2
          %s383 = sadd.s32 %s378, %s382
          %s384 = smul.addr %s383, 64
          %s385 = scalar_lea.hbm %s3, %s384
          %s387 = sshll.u32 %s377, 4
          %s388 = int_to_ptr.vmem [resolvable:$true] %s387
          %390 = dma.hbm_to_vmem [thread:$0]  %s385, 128, %s388, %s374
        $region36: #{tpu_custom_call.1} parent=23 // pred_fallthru
          _
        // Predicated region
        $region37: #{tpu_custom_call.1} parent=23 // pred_check
          %p391 = pneg %p151
        $region38: #{tpu_custom_call.1} parent=23 // pred_check_branch
          %393 = sbr.rel (%p391) target = $region40
        $region39: #{tpu_custom_call.1} parent=23 // pred_region
          %s394 = smul.u32 2, %s41
          %p395 = scmp.lt.s32.totalorder %s40, 1
          %s396 = scalar_select %p395, %s40, 1
          %p397 = scmp.lt.s32.totalorder %s394, 1
          %s398 = scalar_select %p397, %s394, 1
          %s399 = smul.addr %s396, 24
          %s400 = sadd.s32 %s398, %s399
          %s401 = smul.addr %s400, 8
          %s402 = scalar_lea.vmem %s4, %s401
          %s403 = smul.u32 2, %s41
        $region40: #{tpu_custom_call.1} parent=23 // pred_fallthru
          _
      $region24: #{tpu_custom_call.1} parent=5 // pred_fallthru
        _
      %p404 = scmp.le.s32.totalorder 1, %s33
      %p405 = scmp.lt.s32.totalorder %s33, 3
      %p406 = pnand %p404, %p405
      %p407 = pneg %p406
      // Predicated region
      $region41: #{tpu_custom_call.1} parent=5 // pred_check
        _
      $region42: #{tpu_custom_call.1} parent=5 // pred_check_branch
        %409 = sbr.rel (%p406) target = $region44
      $region43: #{tpu_custom_call.1} parent=5 // pred_region
        %s410 = ssub.s32 %s33, 1
        %s411 = sand.u32 %s88, 1
        %s412 = scalar_lea.sflag [#allocation5], %s411
        %s413 = sand.u32 %s88, 1
        %s414 = smul.addr %s413, 8
        %s415 = scalar_lea.vmem [#allocation4], %s414
        // Predicated region
        $region45: #{tpu_custom_call.1} parent=43 // pred_check
          %p416 = pneg %p101
        $region46: #{tpu_custom_call.1} parent=43 // pred_check_branch
          %418 = sbr.rel (%p416) target = $region48
        $region47: #{tpu_custom_call.1} parent=43 // pred_region
          %419 = dma.done %s412, 128
        $region48: #{tpu_custom_call.1} parent=43 // pred_fallthru
          _
        %s420 = sand.u32 %s116, 1
        %s421 = scalar_lea.sflag [#allocation8], %s420
        %s422 = sand.u32 %s116, 1
        %s423 = smul.addr %s422, 8
        %s424 = scalar_lea.vmem [#allocation7], %s423
        // Predicated region
        $region49: #{tpu_custom_call.1} parent=43 // pred_check
          %p425 = pneg %p129
        $region50: #{tpu_custom_call.1} parent=43 // pred_check_branch
          %427 = sbr.rel (%p425) target = $region52
        $region51: #{tpu_custom_call.1} parent=43 // pred_region
          %428 = dma.done %s421, 128
        $region52: #{tpu_custom_call.1} parent=43 // pred_fallthru
          _
        %s429 = smul.u32 2, %s43
        %p430 = scmp.lt.s32.totalorder %s42, 1
        %s431 = scalar_select %p430, %s42, 1
        %p432 = scmp.lt.s32.totalorder %s429, 1
        %s433 = scalar_select %p432, %s429, 1
        %s434 = smul.addr %s431, 2
        %s435 = sadd.s32 %s433, %s434
        %s436 = smul.addr %s435, 4
        %s437 = scalar_lea.vmem %s1, %s436
        %p438 = pneg %p73
        %p439 = pneg %p70
        %s440 = sand.u32 %s88, 1
        %s441 = scalar_lea.sflag [#allocation5], %s440
        %s442 = sand.u32 %s88, 1
        %s443 = smul.addr %s442, 8
        %s444 = scalar_lea.vmem [#allocation4], %s443
        %p445 = pneg %p101
        %p446 = pneg %p98
        %s447 = sand.u32 %s116, 1
        %s448 = scalar_lea.sflag [#allocation8], %s447
        %s449 = sand.u32 %s116, 1
        %s450 = smul.addr %s449, 8
        %s451 = scalar_lea.vmem [#allocation7], %s450
        %p452 = pneg %p129
        %p453 = pneg %p126
        %s454 = smul.u32 2, %s43
        %p455 = scmp.lt.s32.totalorder %s42, 1
        %s456 = scalar_select %p455, %s42, 1
        %p457 = scmp.lt.s32.totalorder %s454, 1
        %s458 = scalar_select %p457, %s454, 1
        %s459 = smul.addr %s456, 24
        %s460 = sadd.s32 %s458, %s459
        %s461 = smul.addr %s460, 8
        %s462 = scalar_lea.vmem %s4, %s461
        %p463 = pneg %p157
        %p464 = pneg %p154
        %p465 = pneg %p178
        %p466 = pneg %p175
        %p467 = pneg %p199
        %p468 = pneg %p196
        %p469 = pneg %p227
        %p470 = pneg %p224
        %s471 = sand.u32 %s214, 1
        %s472 = scalar_lea.sflag [#allocation6], %s471
        %s473 = sand.u32 %s214, 1
        %s474 = smul.addr %s473, 64
        %s475 = scalar_lea.vmem [#allocation9], %s474
        %p476 = pneg %p255
        %p477 = pneg %p252
        %s478 = sand.u32 %s38, 1
        %s479 = scalar_lea.sflag [#allocation11], %s478
        %s480 = sand.u32 %s242, 1
        %s481 = smul.addr %s480, 64
        %s482 = scalar_lea.vmem [#allocation10], %s481
        %p483 = pneg %p283
        %p484 = pneg %p280
        %s485 = sand.u32 %s38, 1
        %s486 = scalar_lea.sflag [#allocation11], %s485
        %s487 = sand.u32 %s270, 1
        %s488 = smul.addr %s487, 64
        %s489 = scalar_lea.vmem [#allocation12], %s488
        %p490 = pneg %p311
        %p491 = pneg %p308
        %s492 = sand.u32 %s298, 1
        %s493 = scalar_lea.sflag [#allocation14], %s492
        %s494 = sand.u32 %s298, 1
        %s495 = smul.addr %s494, 8
        %s496 = scalar_lea.vmem [#allocation13], %s495
        %s497 = smul.u32 2, %s43
        %p498 = scmp.lt.s32.totalorder %s42, 1
        %s499 = scalar_select %p498, %s42, 1
        %p500 = scmp.lt.s32.totalorder %s497, 1
        %s501 = scalar_select %p500, %s497, 1
        %s502 = smul.addr %s499, 2
        %s503 = sadd.s32 %s501, %s502
        %s504 = smul.addr %s503, 4
        %s505 = scalar_lea.vmem %s1, %s504
        %s506 = smul.u32 2, %s43
        %s507 = smul.u32 2, %s43
        %s508 = smul.u32 2, %s43
        %s509 = smul.u32 2, %s43
        %p510 = scmp.lt.s32.totalorder %s42, 1
        %s511 = scalar_select %p510, %s42, 1
        %p512 = scmp.lt.s32.totalorder %s509, 1
        %s513 = scalar_select %p512, %s509, 1
        %s514 = smul.addr %s511, 24
        %s515 = sadd.s32 %s513, %s514
        %s516 = smul.addr %s515, 8
        %s517 = scalar_lea.vmem %s4, %s516
        %s518 = smul.u32 2, %s43
        %s519 = smul.u32 2, %s43
        %s520 = smul.u32 2, %s43
        %s521 = smul.u32 2, %s43
        %v522 = vld [vmem:[%s505] sm:$0xff]
        %v523 = vmul.f32 %v522, %v522
        %v525 = vcombine.high %v523, %v523
        %vm527 = vcmask 1043456
        %v528 = vsel %vm527, %v523, 0.0
        %v529 = vrot.slane %v528, 4
        %v530 = vadd.f32 %v528, %v529
        %v531 = vrot.slane %v530, 2
        %v532 = vadd.f32 %v530, %v531
        %v533 = vrot.slane %v532, 1
        %v534 = vadd.f32 %v532, %v533
        %v535 = vsel %vm527, %v525, 0.0
        %v536 = vrot.slane %v535, 4
        %v537 = vadd.f32 %v535, %v536
        %v538 = vrot.slane %v537, 2
        %v539 = vadd.f32 %v537, %v538
        %v540 = vrot.slane %v539, 1
        %v541 = vadd.f32 %v539, %v540
        %v542 = vadd.f32 %v534, 1e-06
        %v543 = vadd.f32 %v541, 1e-06
        %v544 = vrsqrt.pop %v542
        %v545 = vrsqrt.pop %v543
        %v548 = vcombine.low %v544, %v545
        %v550 = vmul.f32 %v522, %v548
        %v551 = vld [vmem:[%s5] sm:$0xff]
        %v552 = vld [vmem:[%s5 + $0x8] sm:$0xff]
        %v553 = vld [vmem:[%s5 + $0x10] sm:$0xff]
        %v554 = vld [vmem:[%s5 + $0x18] sm:$0xff]
        %v555 = vld [vmem:[%s5 + $0x20] sm:$0xff]
        %v556 = vld [vmem:[%s5 + $0x28] sm:$0xff]
        %v557 = vld [vmem:[%s5 + $0x30] sm:$0xff]
        %v558 = vld [vmem:[%s5 + $0x38] sm:$0xff]
        %v559 = vld [vmem:[%s6] sm:$0xff]
        %v560 = vld [vmem:[%s6 + $0x8] sm:$0xff]
        %v561 = vld [vmem:[%s6 + $0x10] sm:$0xff]
        %v562 = vld [vmem:[%s6 + $0x18] sm:$0xff]
        %v563 = vld [vmem:[%s6 + $0x20] sm:$0xff]
        %v564 = vld [vmem:[%s6 + $0x28] sm:$0xff]
        %v565 = vld [vmem:[%s6 + $0x30] sm:$0xff]
        %v566 = vld [vmem:[%s6 + $0x38] sm:$0xff]
        %568 = vset.pattern.permute.xlu0 0
        %569 = vperm.xlu0 %568, %v559
        %v570 = vpop.permute.xlu0 %569
        %573 = vset.pattern.permute.xlu0 0
        %574 = vperm.xlu0 %573, %v560
        %v575 = vpop.permute.xlu0 %574
        %578 = vset.pattern.permute.xlu0 0
        %579 = vperm.xlu0 %578, %v561
        %v580 = vpop.permute.xlu0 %579
        %583 = vset.pattern.permute.xlu0 0
        %584 = vperm.xlu0 %583, %v562
        %v585 = vpop.permute.xlu0 %584
        %588 = vset.pattern.permute.xlu0 0
        %589 = vperm.xlu0 %588, %v563
        %v590 = vpop.permute.xlu0 %589
        %593 = vset.pattern.permute.xlu0 0
        %594 = vperm.xlu0 %593, %v564
        %v595 = vpop.permute.xlu0 %594
        %598 = vset.pattern.permute.xlu0 0
        %599 = vperm.xlu0 %598, %v565
        %v600 = vpop.permute.xlu0 %599
        %603 = vset.pattern.permute.xlu0 0
        %604 = vperm.xlu0 %603, %v566
        %v605 = vpop.permute.xlu0 %604
        %v608 = vcombine.high %v550, %v550
        %vm609 = vcmask 31744
        %v611 = vsel %vm609, %v551, 0
        %v614 = vsel %vm609, %v552, 0
        %v617 = vsel %vm609, %v553, 0
        %v620 = vsel %vm609, %v554, 0
        %v623 = vsel %vm609, %v555, 0
        %v626 = vsel %vm609, %v556, 0
        %v629 = vsel %vm609, %v557, 0
        %v632 = vsel %vm609, %v558, 0
        %v634 = vsel %vm527, %v550, 0
        %v636 = vsel %vm527, %v608, 0
        %638 = vmatprep.subr.mxu0 0.0
        %639 = vmatpush1.msra.mxu0 0.0
        %640 = vmatprep.subr.mxu0 0.0
        %641 = vmatpush1.msra.mxu0 0.0
        %642 = vmatprep.subr.mxu0 0.0
        %643 = vmatpush1.msra.mxu0 0.0
        %644 = vmatprep.subr.mxu0 0.0
        %645 = vmatpush1.msra.mxu0 0.0
        %646 = vmatprep.subr.mxu0 0.0
        %647 = vmatpush1.msra.mxu0 0.0
        %648 = vmatprep.subr.mxu0 0.0
        %649 = vmatpush1.msra.mxu0 0.0
        %650 = vmatprep.subr.mxu0 0.0
        %651 = vmatpush1.msra.mxu0 0.0
        %652 = vmatprep.subr.mxu0 0.0
        %653 = vmatpush1.msra.mxu0 0.0
        %654 = vmatprep.subr.mxu0 0.0
        %655 = vmatpush1.msra.mxu0 0.0
        %656 = vmatprep.subr.mxu0 0.0
        %657 = vmatpush1.msra.mxu0 0.0
        %658 = vmatprep.subr.mxu0 0.0
        %659 = vmatpush1.msra.mxu0 0.0
        %660 = vmatprep.subr.mxu0 0.0
        %661 = vmatpush1.msra.mxu0 0.0
        %662 = vmatprep.subr.mxu0 0.0
        %663 = vmatpush1.msra.mxu0 0.0
        %664 = vmatprep.subr.mxu0 0.0
        %665 = vmatpush1.msra.mxu0 0.0
        %666 = vmatprep.subr.mxu0 0.0
        %667 = vmatpush1.msra.mxu0 0.0
        %668 = vmatprep.subr.mxu0 %v636
        %669 = vmatpush1.msra.mxu0 %v634
        %670 = vmatprep.subr.mxu0 0.0
        %671 = vmatpush2.msra.mxu0 0.0
        %672 = vmatprep.subr.mxu0 0.0
        %673 = vmatpush2.msra.mxu0 0.0
        %674 = vmatprep.subr.mxu0 0.0
        %675 = vmatpush2.msra.mxu0 0.0
        %676 = vmatprep.subr.mxu0 0.0
        %677 = vmatpush2.msra.mxu0 0.0
        %678 = vmatprep.subr.mxu0 0.0
        %679 = vmatpush2.msra.mxu0 0.0
        %680 = vmatprep.subr.mxu0 0.0
        %681 = vmatpush2.msra.mxu0 0.0
        %682 = vmatprep.subr.mxu0 0.0
        %683 = vmatpush2.msra.mxu0 0.0
        %684 = vmatprep.subr.mxu0 0.0
        %685 = vmatpush2.msra.mxu0 0.0
        %686 = vmatprep.subr.mxu0 0.0
        %687 = vmatpush2.msra.mxu0 0.0
        %688 = vmatprep.subr.mxu0 0.0
        %689 = vmatpush2.msra.mxu0 0.0
        %690 = vmatprep.subr.mxu0 0.0
        %691 = vmatpush2.msra.mxu0 0.0
        %692 = vmatprep.subr.mxu0 0.0
        %693 = vmatpush2.msra.mxu0 0.0
        %694 = vmatprep.subr.mxu0 0.0
        %695 = vmatpush2.msra.mxu0 0.0
        %696 = vmatprep.subr.mxu0 0.0
        %697 = vmatpush2.msra.mxu0 0.0
        %698 = vmatprep.subr.mxu0 0.0
        %699 = vmatpush2.msra.mxu0 0.0
        %700 = vmatprep.subr.mxu0 0.0
        %701 = vmatpush2.msra.mxu0 0.0
        %702 = vmatprep.mubr.f32.mxu0 0.0
        %703 = vmatmul.mubr.f32.gmra.mxu0 %v611
        %v704 = vpop.f32.mrf.mxu0
        %v705 = vadd.f32 %v570, %v704
        %v706 = vpop.f32.mrf.mxu0
        %v707 = vadd.f32 %v570, %v706
        %708 = vmatprep.mubr.f32.mxu0 0.0
        %709 = vmatmul.mubr.f32.gmra.mxu0 %v614
        %v710 = vpop.f32.mrf.mxu0
        %v711 = vadd.f32 %v575, %v710
        %v712 = vpop.f32.mrf.mxu0
        %v713 = vadd.f32 %v575, %v712
        %714 = vmatprep.mubr.f32.mxu0 0.0
        %715 = vmatmul.mubr.f32.gmra.mxu0 %v617
        %v716 = vpop.f32.mrf.mxu0
        %v717 = vadd.f32 %v580, %v716
        %v718 = vpop.f32.mrf.mxu0
        %v719 = vadd.f32 %v580, %v718
        %720 = vmatprep.mubr.f32.mxu0 0.0
        %721 = vmatmul.mubr.f32.gmra.mxu0 %v620
        %v722 = vpop.f32.mrf.mxu0
        %v723 = vadd.f32 %v585, %v722
        %v724 = vpop.f32.mrf.mxu0
        %v725 = vadd.f32 %v585, %v724
        %726 = vmatprep.mubr.f32.mxu0 0.0
        %727 = vmatmul.mubr.f32.gmra.mxu0 %v623
        %v728 = vpop.f32.mrf.mxu0
        %v729 = vadd.f32 %v590, %v728
        %v730 = vpop.f32.mrf.mxu0
        %v731 = vadd.f32 %v590, %v730
        %732 = vmatprep.mubr.f32.mxu0 0.0
        %733 = vmatmul.mubr.f32.gmra.mxu0 %v626
        %v734 = vpop.f32.mrf.mxu0
        %v735 = vadd.f32 %v595, %v734
        %v736 = vpop.f32.mrf.mxu0
        %v737 = vadd.f32 %v595, %v736
        %738 = vmatprep.mubr.f32.mxu0 0.0
        %739 = vmatmul.mubr.f32.gmra.mxu0 %v629
        %v740 = vpop.f32.mrf.mxu0
        %v741 = vadd.f32 %v600, %v740
        %v742 = vpop.f32.mrf.mxu0
        %v743 = vadd.f32 %v600, %v742
        %744 = vmatprep.mubr.f32.mxu0 0.0
        %745 = vmatmul.mubr.f32.gmra.mxu0 %v632
        %v746 = vpop.f32.mrf.mxu0
        %v747 = vadd.f32 %v605, %v746
        %v748 = vpop.f32.mrf.mxu0
        %v749 = vadd.f32 %v605, %v748
        %750 = vdwg.mxu0
        %v751 = vtanh.pop %v705
        %v752 = vtanh.pop %v707
        %v753 = vtanh.pop %v711
        %v754 = vtanh.pop %v713
        %v755 = vtanh.pop %v717
        %v756 = vtanh.pop %v719
        %v757 = vtanh.pop %v723
        %v758 = vtanh.pop %v725
        %v759 = vtanh.pop %v729
        %v760 = vtanh.pop %v731
        %v761 = vtanh.pop %v735
        %v762 = vtanh.pop %v737
        %v763 = vtanh.pop %v741
        %v764 = vtanh.pop %v743
        %v765 = vtanh.pop %v747
        %v766 = vtanh.pop %v749
        %v767 = vmul.f32 %v759, 0.5
        %v768 = vmul.f32 %v760, 0.5
        %v769 = vmul.f32 %v761, 0.5
        %v770 = vmul.f32 %v762, 0.5
        %v771 = vmul.f32 %v763, 0.5
        %v772 = vmul.f32 %v764, 0.5
        %v773 = vmul.f32 %v765, 0.5
        %v774 = vmul.f32 %v766, 0.5
        %v775 = vmul.f32 %v767, 1.442695
        %v776 = vpow.pop %v775
        %v777 = vmul.f32 %v768, 1.442695
        %v778 = vpow.pop %v777
        %v779 = vmul.f32 %v769, 1.442695
        %v780 = vpow.pop %v779
        %v781 = vmul.f32 %v770, 1.442695
        %v782 = vpow.pop %v781
        %v783 = vmul.f32 %v771, 1.442695
        %v784 = vpow.pop %v783
        %v785 = vmul.f32 %v772, 1.442695
        %v786 = vpow.pop %v785
        %v787 = vmul.f32 %v773, 1.442695
        %v788 = vpow.pop %v787
        %v789 = vmul.f32 %v774, 1.442695
        %v790 = vpow.pop %v789
        %v791 = vld [vmem:[%s517] sm:$0xff]
        %v792 = vld [vmem:[%s517 + $0x8] sm:$0xff]
        %v793 = vld [vmem:[%s517 + $0x10] sm:$0xff]
        %v794 = vld [vmem:[%s517 + $0x18] sm:$0xff]
        %v795 = vld [vmem:[%s517 + $0x20] sm:$0xff]
        %v796 = vld [vmem:[%s517 + $0x28] sm:$0xff]
        %v797 = vld [vmem:[%s517 + $0x30] sm:$0xff]
        %v798 = vld [vmem:[%s517 + $0x38] sm:$0xff]
        %v799 = vmul.f32 %v791, %v776
        %v800 = vmul.f32 %v792, %v778
        %v801 = vmul.f32 %v793, %v780
        %v802 = vmul.f32 %v794, %v782
        %v803 = vmul.f32 %v795, %v784
        %v804 = vmul.f32 %v796, %v786
        %v805 = vmul.f32 %v797, %v788
        %v806 = vmul.f32 %v798, %v790
        %v807 = vadd.f32 %v799, %v751
        %v808 = vadd.f32 %v800, %v752
        %v809 = vadd.f32 %v801, %v753
        %v810 = vadd.f32 %v802, %v754
        %v811 = vadd.f32 %v803, %v755
        %v812 = vadd.f32 %v804, %v756
        %v813 = vadd.f32 %v805, %v757
        %v814 = vadd.f32 %v806, %v758
        %815 = vst [vmem:[%s475] sm:$0xff] %v807
        %816 = vst [vmem:[%s475 + $0x8] sm:$0xff] %v808
        %817 = vst [vmem:[%s475 + $0x10] sm:$0xff] %v809
        %818 = vst [vmem:[%s475 + $0x18] sm:$0xff] %v810
        %819 = vst [vmem:[%s475 + $0x20] sm:$0xff] %v811
        %820 = vst [vmem:[%s475 + $0x28] sm:$0xff] %v812
        %821 = vst [vmem:[%s475 + $0x30] sm:$0xff] %v813
        %822 = vst [vmem:[%s475 + $0x38] sm:$0xff] %v814
        %v823 = vsub.f32 0.0, %v807
        %v824 = vsub.f32 0.0, %v808
        %v825 = vsub.f32 0.0, %v809
        %v826 = vsub.f32 0.0, %v810
        %v827 = vsub.f32 0.0, %v811
        %v828 = vsub.f32 0.0, %v812
        %v829 = vsub.f32 0.0, %v813
        %v830 = vsub.f32 0.0, %v814
        %v831 = vmul.f32 %v823, 1.442695
        %v832 = vpow.pop %v831
        %v833 = vmul.f32 %v824, 1.442695
        %v834 = vpow.pop %v833
        %v835 = vmul.f32 %v825, 1.442695
        %v836 = vpow.pop %v835
        %v837 = vmul.f32 %v826, 1.442695
        %v838 = vpow.pop %v837
        %v839 = vmul.f32 %v827, 1.442695
        %v840 = vpow.pop %v839
        %v841 = vmul.f32 %v828, 1.442695
        %v842 = vpow.pop %v841
        %v843 = vmul.f32 %v829, 1.442695
        %v844 = vpow.pop %v843
        %v845 = vmul.f32 %v830, 1.442695
        %v846 = vpow.pop %v845
        %v847 = vadd.f32 %v832, 1.0
        %v848 = vadd.f32 %v834, 1.0
        %v849 = vadd.f32 %v836, 1.0
        %v850 = vadd.f32 %v838, 1.0
        %v851 = vadd.f32 %v840, 1.0
        %v852 = vadd.f32 %v842, 1.0
        %v853 = vadd.f32 %v844, 1.0
        %v854 = vadd.f32 %v846, 1.0
        %v855 = vrcp.pop %v847
        %v856 = vmul.f32 1.0, %v855
        %v857 = vrcp.pop %v848
        %v858 = vmul.f32 1.0, %v857
        %v859 = vrcp.pop %v849
        %v860 = vmul.f32 1.0, %v859
        %v861 = vrcp.pop %v850
        %v862 = vmul.f32 1.0, %v861
        %v863 = vrcp.pop %v851
        %v864 = vmul.f32 1.0, %v863
        %v865 = vrcp.pop %v852
        %v866 = vmul.f32 1.0, %v865
        %v867 = vrcp.pop %v853
        %v868 = vmul.f32 1.0, %v867
        %v869 = vrcp.pop %v854
        %v870 = vmul.f32 1.0, %v869
        %v871 = vlog2.pop %v856
        %v872 = vmul.f32 %v871, 0.6931472
        %v873 = vlog2.pop %v858
        %v874 = vmul.f32 %v873, 0.6931472
        %v875 = vlog2.pop %v860
        %v876 = vmul.f32 %v875, 0.6931472
        %v877 = vlog2.pop %v862
        %v878 = vmul.f32 %v877, 0.6931472
        %v879 = vlog2.pop %v864
        %v880 = vmul.f32 %v879, 0.6931472
        %v881 = vlog2.pop %v866
        %v882 = vmul.f32 %v881, 0.6931472
        %v883 = vlog2.pop %v868
        %v884 = vmul.f32 %v883, 0.6931472
        %v885 = vlog2.pop %v870
        %v886 = vmul.f32 %v885, 0.6931472
        %v887 = vmax.f32 %v872, -100.0
        %v888 = vmax.f32 %v874, -100.0
        %v889 = vmax.f32 %v876, -100.0
        %v890 = vmax.f32 %v878, -100.0
        %v891 = vmax.f32 %v880, -100.0
        %v892 = vmax.f32 %v882, -100.0
        %v893 = vmax.f32 %v884, -100.0
        %v894 = vmax.f32 %v886, -100.0
        %v895 = vsub.f32 %v872, %v807
        %v896 = vsub.f32 %v874, %v808
        %v897 = vsub.f32 %v876, %v809
        %v898 = vsub.f32 %v878, %v810
        %v899 = vsub.f32 %v880, %v811
        %v900 = vsub.f32 %v882, %v812
        %v901 = vsub.f32 %v884, %v813
        %v902 = vsub.f32 %v886, %v814
        %v903 = vmax.f32 %v895, -100.0
        %v904 = vmax.f32 %v896, -100.0
        %v905 = vmax.f32 %v897, -100.0
        %v906 = vmax.f32 %v898, -100.0
        %v907 = vmax.f32 %v899, -100.0
        %v908 = vmax.f32 %v900, -100.0
        %v909 = vmax.f32 %v901, -100.0
        %v910 = vmax.f32 %v902, -100.0
        %v911 = vmul.f32 %v776, %v776
        %v912 = vmul.f32 %v778, %v778
        %v913 = vmul.f32 %v780, %v780
        %v914 = vmul.f32 %v782, %v782
        %v915 = vmul.f32 %v784, %v784
        %v916 = vmul.f32 %v786, %v786
        %v917 = vmul.f32 %v788, %v788
        %v918 = vmul.f32 %v790, %v790
        %v919 = vmul.f32 %v911, %v911
        %v920 = vmul.f32 %v912, %v912
        %v921 = vmul.f32 %v913, %v913
        %v922 = vmul.f32 %v914, %v914
        %v923 = vmul.f32 %v915, %v915
        %v924 = vmul.f32 %v916, %v916
        %v925 = vmul.f32 %v917, %v917
        %v926 = vmul.f32 %v918, %v918
        %v927 = vmul.f32 %v759, -2.0
        %v928 = vmul.f32 %v760, -2.0
        %v929 = vmul.f32 %v761, -2.0
        %v930 = vmul.f32 %v762, -2.0
        %v931 = vmul.f32 %v763, -2.0
        %v932 = vmul.f32 %v764, -2.0
        %v933 = vmul.f32 %v765, -2.0
        %v934 = vmul.f32 %v766, -2.0
        %v935 = vmul.f32 %v927, 1.442695
        %v936 = vpow.pop %v935
        %v937 = vmul.f32 %v928, 1.442695
        %v938 = vpow.pop %v937
        %v939 = vmul.f32 %v929, 1.442695
        %v940 = vpow.pop %v939
        %v941 = vmul.f32 %v930, 1.442695
        %v942 = vpow.pop %v941
        %v943 = vmul.f32 %v931, 1.442695
        %v944 = vpow.pop %v943
        %v945 = vmul.f32 %v932, 1.442695
        %v946 = vpow.pop %v945
        %v947 = vmul.f32 %v933, 1.442695
        %v948 = vpow.pop %v947
        %v949 = vmul.f32 %v934, 1.442695
        %v950 = vpow.pop %v949
        %v951 = vld [vmem:[%s415] sm:$0xff]
        %v952 = vmul.f32 %v951, %v951
        %v954 = vcombine.high %v952, %v952
        %v956 = vsel %vm527, %v952, 0.0
        %v957 = vrot.slane %v956, 4
        %v958 = vadd.f32 %v956, %v957
        %v959 = vrot.slane %v958, 2
        %v960 = vadd.f32 %v958, %v959
        %v961 = vrot.slane %v960, 1
        %v962 = vadd.f32 %v960, %v961
        %v963 = vsel %vm527, %v954, 0.0
        %v964 = vrot.slane %v963, 4
        %v965 = vadd.f32 %v963, %v964
        %v966 = vrot.slane %v965, 2
        %v967 = vadd.f32 %v965, %v966
        %v968 = vrot.slane %v967, 1
        %v969 = vadd.f32 %v967, %v968
        %v970 = vadd.f32 %v962, 1e-06
        %v971 = vadd.f32 %v969, 1e-06
        %v972 = vrsqrt.pop %v970
        %v973 = vrsqrt.pop %v971
        %v976 = vcombine.low %v972, %v973
        %v978 = vmul.f32 %v951, %v976
        %s979 = scalar_lea.vmem %s5, 64
        %v980 = vld [vmem:[%s979] sm:$0xff]
        %v981 = vld [vmem:[%s979 + $0x8] sm:$0xff]
        %v982 = vld [vmem:[%s979 + $0x10] sm:$0xff]
        %v983 = vld [vmem:[%s979 + $0x18] sm:$0xff]
        %v984 = vld [vmem:[%s979 + $0x20] sm:$0xff]
        %v985 = vld [vmem:[%s979 + $0x28] sm:$0xff]
        %v986 = vld [vmem:[%s979 + $0x30] sm:$0xff]
        %v987 = vld [vmem:[%s979 + $0x38] sm:$0xff]
        %s988 = scalar_lea.vmem %s6, 64
        %v989 = vld [vmem:[%s988] sm:$0xff]
        %v990 = vld [vmem:[%s988 + $0x8] sm:$0xff]
        %v991 = vld [vmem:[%s988 + $0x10] sm:$0xff]
        %v992 = vld [vmem:[%s988 + $0x18] sm:$0xff]
        %v993 = vld [vmem:[%s988 + $0x20] sm:$0xff]
        %v994 = vld [vmem:[%s988 + $0x28] sm:$0xff]
        %v995 = vld [vmem:[%s988 + $0x30] sm:$0xff]
        %v996 = vld [vmem:[%s988 + $0x38] sm:$0xff]
        %998 = vset.pattern.permute.xlu0 0
        %999 = vperm.xlu0 %998, %v989
        %v1000 = vpop.permute.xlu0 %999
        %1003 = vset.pattern.permute.xlu0 0
        %1004 = vperm.xlu0 %1003, %v990
        %v1005 = vpop.permute.xlu0 %1004
        %1008 = vset.pattern.permute.xlu0 0
        %1009 = vperm.xlu0 %1008, %v991
        %v1010 = vpop.permute.xlu0 %1009
        %1013 = vset.pattern.permute.xlu0 0
        %1014 = vperm.xlu0 %1013, %v992
        %v1015 = vpop.permute.xlu0 %1014
        %1018 = vset.pattern.permute.xlu0 0
        %1019 = vperm.xlu0 %1018, %v993
        %v1020 = vpop.permute.xlu0 %1019
        %1023 = vset.pattern.permute.xlu0 0
        %1024 = vperm.xlu0 %1023, %v994
        %v1025 = vpop.permute.xlu0 %1024
        %1028 = vset.pattern.permute.xlu0 0
        %1029 = vperm.xlu0 %1028, %v995
        %v1030 = vpop.permute.xlu0 %1029
        %1033 = vset.pattern.permute.xlu0 0
        %1034 = vperm.xlu0 %1033, %v996
        %v1035 = vpop.permute.xlu0 %1034
        %v1038 = vcombine.high %v978, %v978
        %v1040 = vsel %vm609, %v980, 0
        %v1043 = vsel %vm609, %v981, 0
        %v1046 = vsel %vm609, %v982, 0
        %v1049 = vsel %vm609, %v983, 0
        %v1052 = vsel %vm609, %v984, 0
        %v1055 = vsel %vm609, %v985, 0
        %v1058 = vsel %vm609, %v986, 0
        %v1061 = vsel %vm609, %v987, 0
        %v1063 = vsel %vm527, %v978, 0
        %v1065 = vsel %vm527, %v1038, 0
        %1067 = vmatprep.subr.mxu0 0.0
        %1068 = vmatpush1.msra.mxu0 0.0
        %1069 = vmatprep.subr.mxu0 0.0
        %1070 = vmatpush1.msra.mxu0 0.0
        %1071 = vmatprep.subr.mxu0 0.0
        %1072 = vmatpush1.msra.mxu0 0.0
        %1073 = vmatprep.subr.mxu0 0.0
        %1074 = vmatpush1.msra.mxu0 0.0
        %1075 = vmatprep.subr.mxu0 0.0
        %1076 = vmatpush1.msra.mxu0 0.0
        %1077 = vmatprep.subr.mxu0 0.0
        %1078 = vmatpush1.msra.mxu0 0.0
        %1079 = vmatprep.subr.mxu0 0.0
        %1080 = vmatpush1.msra.mxu0 0.0
        %1081 = vmatprep.subr.mxu0 0.0
        %1082 = vmatpush1.msra.mxu0 0.0
        %1083 = vmatprep.subr.mxu0 0.0
        %1084 = vmatpush1.msra.mxu0 0.0
        %1085 = vmatprep.subr.mxu0 0.0
        %1086 = vmatpush1.msra.mxu0 0.0
        %1087 = vmatprep.subr.mxu0 0.0
        %1088 = vmatpush1.msra.mxu0 0.0
        %1089 = vmatprep.subr.mxu0 0.0
        %1090 = vmatpush1.msra.mxu0 0.0
        %1091 = vmatprep.subr.mxu0 0.0
        %1092 = vmatpush1.msra.mxu0 0.0
        %1093 = vmatprep.subr.mxu0 0.0
        %1094 = vmatpush1.msra.mxu0 0.0
        %1095 = vmatprep.subr.mxu0 0.0
        %1096 = vmatpush1.msra.mxu0 0.0
        %1097 = vmatprep.subr.mxu0 %v1065
        %1098 = vmatpush1.msra.mxu0 %v1063
        %1099 = vmatprep.subr.mxu0 0.0
        %1100 = vmatpush2.msra.mxu0 0.0
        %1101 = vmatprep.subr.mxu0 0.0
        %1102 = vmatpush2.msra.mxu0 0.0
        %1103 = vmatprep.subr.mxu0 0.0
        %1104 = vmatpush2.msra.mxu0 0.0
        %1105 = vmatprep.subr.mxu0 0.0
        %1106 = vmatpush2.msra.mxu0 0.0
        %1107 = vmatprep.subr.mxu0 0.0
        %1108 = vmatpush2.msra.mxu0 0.0
        %1109 = vmatprep.subr.mxu0 0.0
        %1110 = vmatpush2.msra.mxu0 0.0
        %1111 = vmatprep.subr.mxu0 0.0
        %1112 = vmatpush2.msra.mxu0 0.0
        %1113 = vmatprep.subr.mxu0 0.0
        %1114 = vmatpush2.msra.mxu0 0.0
        %1115 = vmatprep.subr.mxu0 0.0
        %1116 = vmatpush2.msra.mxu0 0.0
        %1117 = vmatprep.subr.mxu0 0.0
        %1118 = vmatpush2.msra.mxu0 0.0
        %1119 = vmatprep.subr.mxu0 0.0
        %1120 = vmatpush2.msra.mxu0 0.0
        %1121 = vmatprep.subr.mxu0 0.0
        %1122 = vmatpush2.msra.mxu0 0.0
        %1123 = vmatprep.subr.mxu0 0.0
        %1124 = vmatpush2.msra.mxu0 0.0
        %1125 = vmatprep.subr.mxu0 0.0
        %1126 = vmatpush2.msra.mxu0 0.0
        %1127 = vmatprep.subr.mxu0 0.0
        %1128 = vmatpush2.msra.mxu0 0.0
        %1129 = vmatprep.subr.mxu0 0.0
        %1130 = vmatpush2.msra.mxu0 0.0
        %1131 = vmatprep.mubr.f32.mxu0 0.0
        %1132 = vmatmul.mubr.f32.gmra.mxu0 %v1040
        %v1133 = vpop.f32.mrf.mxu0
        %v1134 = vadd.f32 %v1000, %v1133
        %v1135 = vpop.f32.mrf.mxu0
        %v1136 = vadd.f32 %v1000, %v1135
        %1137 = vmatprep.mubr.f32.mxu0 0.0
        %1138 = vmatmul.mubr.f32.gmra.mxu0 %v1043
        %v1139 = vpop.f32.mrf.mxu0
        %v1140 = vadd.f32 %v1005, %v1139
        %v1141 = vpop.f32.mrf.mxu0
        %v1142 = vadd.f32 %v1005, %v1141
        %1143 = vmatprep.mubr.f32.mxu0 0.0
        %1144 = vmatmul.mubr.f32.gmra.mxu0 %v1046
        %v1145 = vpop.f32.mrf.mxu0
        %v1146 = vadd.f32 %v1010, %v1145
        %v1147 = vpop.f32.mrf.mxu0
        %v1148 = vadd.f32 %v1010, %v1147
        %1149 = vmatprep.mubr.f32.mxu0 0.0
        %1150 = vmatmul.mubr.f32.gmra.mxu0 %v1049
        %v1151 = vpop.f32.mrf.mxu0
        %v1152 = vadd.f32 %v1015, %v1151
        %v1153 = vpop.f32.mrf.mxu0
        %v1154 = vadd.f32 %v1015, %v1153
        %1155 = vmatprep.mubr.f32.mxu0 0.0
        %1156 = vmatmul.mubr.f32.gmra.mxu0 %v1052
        %v1157 = vpop.f32.mrf.mxu0
        %v1158 = vadd.f32 %v1020, %v1157
        %v1159 = vpop.f32.mrf.mxu0
        %v1160 = vadd.f32 %v1020, %v1159
        %1161 = vmatprep.mubr.f32.mxu0 0.0
        %1162 = vmatmul.mubr.f32.gmra.mxu0 %v1055
        %v1163 = vpop.f32.mrf.mxu0
        %v1164 = vadd.f32 %v1025, %v1163
        %v1165 = vpop.f32.mrf.mxu0
        %v1166 = vadd.f32 %v1025, %v1165
        %1167 = vmatprep.mubr.f32.mxu0 0.0
        %1168 = vmatmul.mubr.f32.gmra.mxu0 %v1058
        %v1169 = vpop.f32.mrf.mxu0
        %v1170 = vadd.f32 %v1030, %v1169
        %v1171 = vpop.f32.mrf.mxu0
        %v1172 = vadd.f32 %v1030, %v1171
        %1173 = vmatprep.mubr.f32.mxu0 0.0
        %1174 = vmatmul.mubr.f32.gmra.mxu0 %v1061
        %v1175 = vpop.f32.mrf.mxu0
        %v1176 = vadd.f32 %v1035, %v1175
        %v1177 = vpop.f32.mrf.mxu0
        %v1178 = vadd.f32 %v1035, %v1177
        %1179 = vdwg.mxu0
        %v1180 = vtanh.pop %v1134
        %v1181 = vtanh.pop %v1136
        %v1182 = vtanh.pop %v1140
        %v1183 = vtanh.pop %v1142
        %v1184 = vtanh.pop %v1146
        %v1185 = vtanh.pop %v1148
        %v1186 = vtanh.pop %v1152
        %v1187 = vtanh.pop %v1154
        %v1188 = vtanh.pop %v1158
        %v1189 = vtanh.pop %v1160
        %v1190 = vtanh.pop %v1164
        %v1191 = vtanh.pop %v1166
        %v1192 = vtanh.pop %v1170
        %v1193 = vtanh.pop %v1172
        %v1194 = vtanh.pop %v1176
        %v1195 = vtanh.pop %v1178
        %v1196 = vmul.f32 %v1188, 0.5
        %v1197 = vmul.f32 %v1189, 0.5
        %v1198 = vmul.f32 %v1190, 0.5
        %v1199 = vmul.f32 %v1191, 0.5
        %v1200 = vmul.f32 %v1192, 0.5
        %v1201 = vmul.f32 %v1193, 0.5
        %v1202 = vmul.f32 %v1194, 0.5
        %v1203 = vmul.f32 %v1195, 0.5
        %v1204 = vmul.f32 %v1196, 1.442695
        %v1205 = vpow.pop %v1204
        %v1206 = vmul.f32 %v1197, 1.442695
        %v1207 = vpow.pop %v1206
        %v1208 = vmul.f32 %v1198, 1.442695
        %v1209 = vpow.pop %v1208
        %v1210 = vmul.f32 %v1199, 1.442695
        %v1211 = vpow.pop %v1210
        %v1212 = vmul.f32 %v1200, 1.442695
        %v1213 = vpow.pop %v1212
        %v1214 = vmul.f32 %v1201, 1.442695
        %v1215 = vpow.pop %v1214
        %v1216 = vmul.f32 %v1202, 1.442695
        %v1217 = vpow.pop %v1216
        %v1218 = vmul.f32 %v1203, 1.442695
        %v1219 = vpow.pop %v1218
        %v1220 = vld [vmem:[%s517 + $0x40] sm:$0xff]
        %v1221 = vld [vmem:[%s517 + $0x48] sm:$0xff]
        %v1222 = vld [vmem:[%s517 + $0x50] sm:$0xff]
        %v1223 = vld [vmem:[%s517 + $0x58] sm:$0xff]
        %v1224 = vld [vmem:[%s517 + $0x60] sm:$0xff]
        %v1225 = vld [vmem:[%s517 + $0x68] sm:$0xff]
        %v1226 = vld [vmem:[%s517 + $0x70] sm:$0xff]
        %v1227 = vld [vmem:[%s517 + $0x78] sm:$0xff]
        %v1228 = vmul.f32 %v1220, %v1205
        %v1229 = vmul.f32 %v1221, %v1207
        %v1230 = vmul.f32 %v1222, %v1209
        %v1231 = vmul.f32 %v1223, %v1211
        %v1232 = vmul.f32 %v1224, %v1213
        %v1233 = vmul.f32 %v1225, %v1215
        %v1234 = vmul.f32 %v1226, %v1217
        %v1235 = vmul.f32 %v1227, %v1219
        %v1236 = vadd.f32 %v1228, %v1180
        %v1237 = vadd.f32 %v1229, %v1181
        %v1238 = vadd.f32 %v1230, %v1182
        %v1239 = vadd.f32 %v1231, %v1183
        %v1240 = vadd.f32 %v1232, %v1184
        %v1241 = vadd.f32 %v1233, %v1185
        %v1242 = vadd.f32 %v1234, %v1186
        %v1243 = vadd.f32 %v1235, %v1187
        %1244 = vst [vmem:[%s482] sm:$0xff] %v1236
        %1245 = vst [vmem:[%s482 + $0x8] sm:$0xff] %v1237
        %1246 = vst [vmem:[%s482 + $0x10] sm:$0xff] %v1238
        %1247 = vst [vmem:[%s482 + $0x18] sm:$0xff] %v1239
        %1248 = vst [vmem:[%s482 + $0x20] sm:$0xff] %v1240
        %1249 = vst [vmem:[%s482 + $0x28] sm:$0xff] %v1241
        %1250 = vst [vmem:[%s482 + $0x30] sm:$0xff] %v1242
        %1251 = vst [vmem:[%s482 + $0x38] sm:$0xff] %v1243
        %v1252 = vsub.f32 0.0, %v1236
        %v1253 = vsub.f32 0.0, %v1237
        %v1254 = vsub.f32 0.0, %v1238
        %v1255 = vsub.f32 0.0, %v1239
        %v1256 = vsub.f32 0.0, %v1240
        %v1257 = vsub.f32 0.0, %v1241
        %v1258 = vsub.f32 0.0, %v1242
        %v1259 = vsub.f32 0.0, %v1243
        %v1260 = vmul.f32 %v1252, 1.442695
        %v1261 = vpow.pop %v1260
        %v1262 = vmul.f32 %v1253, 1.442695
        %v1263 = vpow.pop %v1262
        %v1264 = vmul.f32 %v1254, 1.442695
        %v1265 = vpow.pop %v1264
        %v1266 = vmul.f32 %v1255, 1.442695
        %v1267 = vpow.pop %v1266
        %v1268 = vmul.f32 %v1256, 1.442695
        %v1269 = vpow.pop %v1268
        %v1270 = vmul.f32 %v1257, 1.442695
        %v1271 = vpow.pop %v1270
        %v1272 = vmul.f32 %v1258, 1.442695
        %v1273 = vpow.pop %v1272
        %v1274 = vmul.f32 %v1259, 1.442695
        %v1275 = vpow.pop %v1274
        %v1276 = vadd.f32 %v1261, 1.0
        %v1277 = vadd.f32 %v1263, 1.0
        %v1278 = vadd.f32 %v1265, 1.0
        %v1279 = vadd.f32 %v1267, 1.0
        %v1280 = vadd.f32 %v1269, 1.0
        %v1281 = vadd.f32 %v1271, 1.0
        %v1282 = vadd.f32 %v1273, 1.0
        %v1283 = vadd.f32 %v1275, 1.0
        %v1284 = vrcp.pop %v1276
        %v1285 = vmul.f32 1.0, %v1284
        %v1286 = vrcp.pop %v1277
        %v1287 = vmul.f32 1.0, %v1286
        %v1288 = vrcp.pop %v1278
        %v1289 = vmul.f32 1.0, %v1288
        %v1290 = vrcp.pop %v1279
        %v1291 = vmul.f32 1.0, %v1290
        %v1292 = vrcp.pop %v1280
        %v1293 = vmul.f32 1.0, %v1292
        %v1294 = vrcp.pop %v1281
        %v1295 = vmul.f32 1.0, %v1294
        %v1296 = vrcp.pop %v1282
        %v1297 = vmul.f32 1.0, %v1296
        %v1298 = vrcp.pop %v1283
        %v1299 = vmul.f32 1.0, %v1298
        %v1300 = vlog2.pop %v1285
        %v1301 = vmul.f32 %v1300, 0.6931472
        %v1302 = vlog2.pop %v1287
        %v1303 = vmul.f32 %v1302, 0.6931472
        %v1304 = vlog2.pop %v1289
        %v1305 = vmul.f32 %v1304, 0.6931472
        %v1306 = vlog2.pop %v1291
        %v1307 = vmul.f32 %v1306, 0.6931472
        %v1308 = vlog2.pop %v1293
        %v1309 = vmul.f32 %v1308, 0.6931472
        %v1310 = vlog2.pop %v1295
        %v1311 = vmul.f32 %v1310, 0.6931472
        %v1312 = vlog2.pop %v1297
        %v1313 = vmul.f32 %v1312, 0.6931472
        %v1314 = vlog2.pop %v1299
        %v1315 = vmul.f32 %v1314, 0.6931472
        %v1316 = vmax.f32 %v1301, -100.0
        %v1317 = vmax.f32 %v1303, -100.0
        %v1318 = vmax.f32 %v1305, -100.0
        %v1319 = vmax.f32 %v1307, -100.0
        %v1320 = vmax.f32 %v1309, -100.0
        %v1321 = vmax.f32 %v1311, -100.0
        %v1322 = vmax.f32 %v1313, -100.0
        %v1323 = vmax.f32 %v1315, -100.0
        %v1324 = vsub.f32 %v1301, %v1236
        %v1325 = vsub.f32 %v1303, %v1237
        %v1326 = vsub.f32 %v1305, %v1238
        %v1327 = vsub.f32 %v1307, %v1239
        %v1328 = vsub.f32 %v1309, %v1240
        %v1329 = vsub.f32 %v1311, %v1241
        %v1330 = vsub.f32 %v1313, %v1242
        %v1331 = vsub.f32 %v1315, %v1243
        %v1332 = vmax.f32 %v1324, -100.0
        %v1333 = vmax.f32 %v1325, -100.0
        %v1334 = vmax.f32 %v1326, -100.0
        %v1335 = vmax.f32 %v1327, -100.0
        %v1336 = vmax.f32 %v1328, -100.0
        %v1337 = vmax.f32 %v1329, -100.0
        %v1338 = vmax.f32 %v1330, -100.0
        %v1339 = vmax.f32 %v1331, -100.0
        %v1340 = vmul.f32 %v1205, %v1205
        %v1341 = vmul.f32 %v1207, %v1207
        %v1342 = vmul.f32 %v1209, %v1209
        %v1343 = vmul.f32 %v1211, %v1211
        %v1344 = vmul.f32 %v1213, %v1213
        %v1345 = vmul.f32 %v1215, %v1215
        %v1346 = vmul.f32 %v1217, %v1217
        %v1347 = vmul.f32 %v1219, %v1219
        %v1348 = vmul.f32 %v1340, %v1340
        %v1349 = vmul.f32 %v1341, %v1341
        %v1350 = vmul.f32 %v1342, %v1342
        %v1351 = vmul.f32 %v1343, %v1343
        %v1352 = vmul.f32 %v1344, %v1344
        %v1353 = vmul.f32 %v1345, %v1345
        %v1354 = vmul.f32 %v1346, %v1346
        %v1355 = vmul.f32 %v1347, %v1347
        %v1356 = vmul.f32 %v1188, -2.0
        %v1357 = vmul.f32 %v1189, -2.0
        %v1358 = vmul.f32 %v1190, -2.0
        %v1359 = vmul.f32 %v1191, -2.0
        %v1360 = vmul.f32 %v1192, -2.0
        %v1361 = vmul.f32 %v1193, -2.0
        %v1362 = vmul.f32 %v1194, -2.0
        %v1363 = vmul.f32 %v1195, -2.0
        %v1364 = vmul.f32 %v1356, 1.442695
        %v1365 = vpow.pop %v1364
        %v1366 = vmul.f32 %v1357, 1.442695
        %v1367 = vpow.pop %v1366
        %v1368 = vmul.f32 %v1358, 1.442695
        %v1369 = vpow.pop %v1368
        %v1370 = vmul.f32 %v1359, 1.442695
        %v1371 = vpow.pop %v1370
        %v1372 = vmul.f32 %v1360, 1.442695
        %v1373 = vpow.pop %v1372
        %v1374 = vmul.f32 %v1361, 1.442695
        %v1375 = vpow.pop %v1374
        %v1376 = vmul.f32 %v1362, 1.442695
        %v1377 = vpow.pop %v1376
        %v1378 = vmul.f32 %v1363, 1.442695
        %v1379 = vpow.pop %v1378
        %v1380 = vld [vmem:[%s424] sm:$0xff]
        %v1381 = vmul.f32 %v1380, %v1380
        %v1383 = vcombine.high %v1381, %v1381
        %v1385 = vsel %vm527, %v1381, 0.0
        %v1386 = vrot.slane %v1385, 4
        %v1387 = vadd.f32 %v1385, %v1386
        %v1388 = vrot.slane %v1387, 2
        %v1389 = vadd.f32 %v1387, %v1388
        %v1390 = vrot.slane %v1389, 1
        %v1391 = vadd.f32 %v1389, %v1390
        %v1392 = vsel %vm527, %v1383, 0.0
        %v1393 = vrot.slane %v1392, 4
        %v1394 = vadd.f32 %v1392, %v1393
        %v1395 = vrot.slane %v1394, 2
        %v1396 = vadd.f32 %v1394, %v1395
        %v1397 = vrot.slane %v1396, 1
        %v1398 = vadd.f32 %v1396, %v1397
        %v1399 = vadd.f32 %v1391, 1e-06
        %v1400 = vadd.f32 %v1398, 1e-06
        %v1401 = vrsqrt.pop %v1399
        %v1402 = vrsqrt.pop %v1400
        %v1405 = vcombine.low %v1401, %v1402
        %v1407 = vmul.f32 %v1380, %v1405
        %s1408 = scalar_lea.vmem %s5, 128
        %v1409 = vld [vmem:[%s1408] sm:$0xff]
        %v1410 = vld [vmem:[%s1408 + $0x8] sm:$0xff]
        %v1411 = vld [vmem:[%s1408 + $0x10] sm:$0xff]
        %v1412 = vld [vmem:[%s1408 + $0x18] sm:$0xff]
        %v1413 = vld [vmem:[%s1408 + $0x20] sm:$0xff]
        %v1414 = vld [vmem:[%s1408 + $0x28] sm:$0xff]
        %v1415 = vld [vmem:[%s1408 + $0x30] sm:$0xff]
        %v1416 = vld [vmem:[%s1408 + $0x38] sm:$0xff]
        %s1417 = scalar_lea.vmem %s6, 128
        %v1418 = vld [vmem:[%s1417] sm:$0xff]
        %v1419 = vld [vmem:[%s1417 + $0x8] sm:$0xff]
        %v1420 = vld [vmem:[%s1417 + $0x10] sm:$0xff]
        %v1421 = vld [vmem:[%s1417 + $0x18] sm:$0xff]
        %v1422 = vld [vmem:[%s1417 + $0x20] sm:$0xff]
        %v1423 = vld [vmem:[%s1417 + $0x28] sm:$0xff]
        %v1424 = vld [vmem:[%s1417 + $0x30] sm:$0xff]
        %v1425 = vld [vmem:[%s1417 + $0x38] sm:$0xff]
        %1427 = vset.pattern.permute.xlu0 0
        %1428 = vperm.xlu0 %1427, %v1418
        %v1429 = vpop.permute.xlu0 %1428
        %1432 = vset.pattern.permute.xlu0 0
        %1433 = vperm.xlu0 %1432, %v1419
        %v1434 = vpop.permute.xlu0 %1433
        %1437 = vset.pattern.permute.xlu0 0
        %1438 = vperm.xlu0 %1437, %v1420
        %v1439 = vpop.permute.xlu0 %1438
        %1442 = vset.pattern.permute.xlu0 0
        %1443 = vperm.xlu0 %1442, %v1421
        %v1444 = vpop.permute.xlu0 %1443
        %1447 = vset.pattern.permute.xlu0 0
        %1448 = vperm.xlu0 %1447, %v1422
        %v1449 = vpop.permute.xlu0 %1448
        %1452 = vset.pattern.permute.xlu0 0
        %1453 = vperm.xlu0 %1452, %v1423
        %v1454 = vpop.permute.xlu0 %1453
        %1457 = vset.pattern.permute.xlu0 0
        %1458 = vperm.xlu0 %1457, %v1424
        %v1459 = vpop.permute.xlu0 %1458
        %1462 = vset.pattern.permute.xlu0 0
        %1463 = vperm.xlu0 %1462, %v1425
        %v1464 = vpop.permute.xlu0 %1463
        %v1467 = vcombine.high %v1407, %v1407
        %v1469 = vsel %vm609, %v1409, 0
        %v1472 = vsel %vm609, %v1410, 0
        %v1475 = vsel %vm609, %v1411, 0
        %v1478 = vsel %vm609, %v1412, 0
        %v1481 = vsel %vm609, %v1413, 0
        %v1484 = vsel %vm609, %v1414, 0
        %v1487 = vsel %vm609, %v1415, 0
        %v1490 = vsel %vm609, %v1416, 0
        %v1492 = vsel %vm527, %v1407, 0
        %v1494 = vsel %vm527, %v1467, 0
        %1496 = vmatprep.subr.mxu0 0.0
        %1497 = vmatpush1.msra.mxu0 0.0
        %1498 = vmatprep.subr.mxu0 0.0
        %1499 = vmatpush1.msra.mxu0 0.0
        %1500 = vmatprep.subr.mxu0 0.0
        %1501 = vmatpush1.msra.mxu0 0.0
        %1502 = vmatprep.subr.mxu0 0.0
        %1503 = vmatpush1.msra.mxu0 0.0
        %1504 = vmatprep.subr.mxu0 0.0
        %1505 = vmatpush1.msra.mxu0 0.0
        %1506 = vmatprep.subr.mxu0 0.0
        %1507 = vmatpush1.msra.mxu0 0.0
        %1508 = vmatprep.subr.mxu0 0.0
        %1509 = vmatpush1.msra.mxu0 0.0
        %1510 = vmatprep.subr.mxu0 0.0
        %1511 = vmatpush1.msra.mxu0 0.0
        %1512 = vmatprep.subr.mxu0 0.0
        %1513 = vmatpush1.msra.mxu0 0.0
        %1514 = vmatprep.subr.mxu0 0.0
        %1515 = vmatpush1.msra.mxu0 0.0
        %1516 = vmatprep.subr.mxu0 0.0
        %1517 = vmatpush1.msra.mxu0 0.0
        %1518 = vmatprep.subr.mxu0 0.0
        %1519 = vmatpush1.msra.mxu0 0.0
        %1520 = vmatprep.subr.mxu0 0.0
        %1521 = vmatpush1.msra.mxu0 0.0
        %1522 = vmatprep.subr.mxu0 0.0
        %1523 = vmatpush1.msra.mxu0 0.0
        %1524 = vmatprep.subr.mxu0 0.0
        %1525 = vmatpush1.msra.mxu0 0.0
        %1526 = vmatprep.subr.mxu0 %v1494
        %1527 = vmatpush1.msra.mxu0 %v1492
        %1528 = vmatprep.subr.mxu0 0.0
        %1529 = vmatpush2.msra.mxu0 0.0
        %1530 = vmatprep.subr.mxu0 0.0
        %1531 = vmatpush2.msra.mxu0 0.0
        %1532 = vmatprep.subr.mxu0 0.0
        %1533 = vmatpush2.msra.mxu0 0.0
        %1534 = vmatprep.subr.mxu0 0.0
        %1535 = vmatpush2.msra.mxu0 0.0
        %1536 = vmatprep.subr.mxu0 0.0
        %1537 = vmatpush2.msra.mxu0 0.0
        %1538 = vmatprep.subr.mxu0 0.0
        %1539 = vmatpush2.msra.mxu0 0.0
        %1540 = vmatprep.subr.mxu0 0.0
        %1541 = vmatpush2.msra.mxu0 0.0
        %1542 = vmatprep.subr.mxu0 0.0
        %1543 = vmatpush2.msra.mxu0 0.0
        %1544 = vmatprep.subr.mxu0 0.0
        %1545 = vmatpush2.msra.mxu0 0.0
        %1546 = vmatprep.subr.mxu0 0.0
        %1547 = vmatpush2.msra.mxu0 0.0
        %1548 = vmatprep.subr.mxu0 0.0
        %1549 = vmatpush2.msra.mxu0 0.0
        %1550 = vmatprep.subr.mxu0 0.0
        %1551 = vmatpush2.msra.mxu0 0.0
        %1552 = vmatprep.subr.mxu0 0.0
        %1553 = vmatpush2.msra.mxu0 0.0
        %1554 = vmatprep.subr.mxu0 0.0
        %1555 = vmatpush2.msra.mxu0 0.0
        %1556 = vmatprep.subr.mxu0 0.0
        %1557 = vmatpush2.msra.mxu0 0.0
        %1558 = vmatprep.subr.mxu0 0.0
        %1559 = vmatpush2.msra.mxu0 0.0
        %1560 = vmatprep.mubr.f32.mxu0 0.0
        %1561 = vmatmul.mubr.f32.gmra.mxu0 %v1469
        %v1562 = vpop.f32.mrf.mxu0
        %v1563 = vadd.f32 %v1429, %v1562
        %v1564 = vpop.f32.mrf.mxu0
        %v1565 = vadd.f32 %v1429, %v1564
        %1566 = vmatprep.mubr.f32.mxu0 0.0
        %1567 = vmatmul.mubr.f32.gmra.mxu0 %v1472
        %v1568 = vpop.f32.mrf.mxu0
        %v1569 = vadd.f32 %v1434, %v1568
        %v1570 = vpop.f32.mrf.mxu0
        %v1571 = vadd.f32 %v1434, %v1570
        %1572 = vmatprep.mubr.f32.mxu0 0.0
        %1573 = vmatmul.mubr.f32.gmra.mxu0 %v1475
        %v1574 = vpop.f32.mrf.mxu0
        %v1575 = vadd.f32 %v1439, %v1574
        %v1576 = vpop.f32.mrf.mxu0
        %v1577 = vadd.f32 %v1439, %v1576
        %1578 = vmatprep.mubr.f32.mxu0 0.0
        %1579 = vmatmul.mubr.f32.gmra.mxu0 %v1478
        %v1580 = vpop.f32.mrf.mxu0
        %v1581 = vadd.f32 %v1444, %v1580
        %v1582 = vpop.f32.mrf.mxu0
        %v1583 = vadd.f32 %v1444, %v1582
        %1584 = vmatprep.mubr.f32.mxu0 0.0
        %1585 = vmatmul.mubr.f32.gmra.mxu0 %v1481
        %v1586 = vpop.f32.mrf.mxu0
        %v1587 = vadd.f32 %v1449, %v1586
        %v1588 = vpop.f32.mrf.mxu0
        %v1589 = vadd.f32 %v1449, %v1588
        %1590 = vmatprep.mubr.f32.mxu0 0.0
        %1591 = vmatmul.mubr.f32.gmra.mxu0 %v1484
        %v1592 = vpop.f32.mrf.mxu0
        %v1593 = vadd.f32 %v1454, %v1592
        %v1594 = vpop.f32.mrf.mxu0
        %v1595 = vadd.f32 %v1454, %v1594
        %1596 = vmatprep.mubr.f32.mxu0 0.0
        %1597 = vmatmul.mubr.f32.gmra.mxu0 %v1487
        %v1598 = vpop.f32.mrf.mxu0
        %v1599 = vadd.f32 %v1459, %v1598
        %v1600 = vpop.f32.mrf.mxu0
        %v1601 = vadd.f32 %v1459, %v1600
        %1602 = vmatprep.mubr.f32.mxu0 0.0
        %1603 = vmatmul.mubr.f32.gmra.mxu0 %v1490
        %v1604 = vpop.f32.mrf.mxu0
        %v1605 = vadd.f32 %v1464, %v1604
        %v1606 = vpop.f32.mrf.mxu0
        %v1607 = vadd.f32 %v1464, %v1606
        %1608 = vdwg.mxu0
        %v1609 = vtanh.pop %v1563
        %v1610 = vtanh.pop %v1565
        %v1611 = vtanh.pop %v1569
        %v1612 = vtanh.pop %v1571
        %v1613 = vtanh.pop %v1575
        %v1614 = vtanh.pop %v1577
        %v1615 = vtanh.pop %v1581
        %v1616 = vtanh.pop %v1583
        %v1617 = vtanh.pop %v1587
        %v1618 = vtanh.pop %v1589
        %v1619 = vtanh.pop %v1593
        %v1620 = vtanh.pop %v1595
        %v1621 = vtanh.pop %v1599
        %v1622 = vtanh.pop %v1601
        %v1623 = vtanh.pop %v1605
        %v1624 = vtanh.pop %v1607
        %v1625 = vmul.f32 %v1617, 0.5
        %v1626 = vmul.f32 %v1618, 0.5
        %v1627 = vmul.f32 %v1619, 0.5
        %v1628 = vmul.f32 %v1620, 0.5
        %v1629 = vmul.f32 %v1621, 0.5
        %v1630 = vmul.f32 %v1622, 0.5
        %v1631 = vmul.f32 %v1623, 0.5
        %v1632 = vmul.f32 %v1624, 0.5
        %v1633 = vmul.f32 %v1625, 1.442695
        %v1634 = vpow.pop %v1633
        %v1635 = vmul.f32 %v1626, 1.442695
        %v1636 = vpow.pop %v1635
        %v1637 = vmul.f32 %v1627, 1.442695
        %v1638 = vpow.pop %v1637
        %v1639 = vmul.f32 %v1628, 1.442695
        %v1640 = vpow.pop %v1639
        %v1641 = vmul.f32 %v1629, 1.442695
        %v1642 = vpow.pop %v1641
        %v1643 = vmul.f32 %v1630, 1.442695
        %v1644 = vpow.pop %v1643
        %v1645 = vmul.f32 %v1631, 1.442695
        %v1646 = vpow.pop %v1645
        %v1647 = vmul.f32 %v1632, 1.442695
        %v1648 = vpow.pop %v1647
        %v1649 = vld [vmem:[%s517 + $0x80] sm:$0xff]
        %v1650 = vld [vmem:[%s517 + $0x88] sm:$0xff]
        %v1651 = vld [vmem:[%s517 + $0x90] sm:$0xff]
        %v1652 = vld [vmem:[%s517 + $0x98] sm:$0xff]
        %v1653 = vld [vmem:[%s517 + $0xa0] sm:$0xff]
        %v1654 = vld [vmem:[%s517 + $0xa8] sm:$0xff]
        %v1655 = vld [vmem:[%s517 + $0xb0] sm:$0xff]
        %v1656 = vld [vmem:[%s517 + $0xb8] sm:$0xff]
        %v1657 = vmul.f32 %v1649, %v1634
        %v1658 = vmul.f32 %v1650, %v1636
        %v1659 = vmul.f32 %v1651, %v1638
        %v1660 = vmul.f32 %v1652, %v1640
        %v1661 = vmul.f32 %v1653, %v1642
        %v1662 = vmul.f32 %v1654, %v1644
        %v1663 = vmul.f32 %v1655, %v1646
        %v1664 = vmul.f32 %v1656, %v1648
        %v1665 = vadd.f32 %v1657, %v1609
        %v1666 = vadd.f32 %v1658, %v1610
        %v1667 = vadd.f32 %v1659, %v1611
        %v1668 = vadd.f32 %v1660, %v1612
        %v1669 = vadd.f32 %v1661, %v1613
        %v1670 = vadd.f32 %v1662, %v1614
        %v1671 = vadd.f32 %v1663, %v1615
        %v1672 = vadd.f32 %v1664, %v1616
        %1673 = vst [vmem:[%s489] sm:$0xff] %v1665
        %1674 = vst [vmem:[%s489 + $0x8] sm:$0xff] %v1666
        %1675 = vst [vmem:[%s489 + $0x10] sm:$0xff] %v1667
        %1676 = vst [vmem:[%s489 + $0x18] sm:$0xff] %v1668
        %1677 = vst [vmem:[%s489 + $0x20] sm:$0xff] %v1669
        %1678 = vst [vmem:[%s489 + $0x28] sm:$0xff] %v1670
        %1679 = vst [vmem:[%s489 + $0x30] sm:$0xff] %v1671
        %1680 = vst [vmem:[%s489 + $0x38] sm:$0xff] %v1672
        %v1681 = vsub.f32 0.0, %v1665
        %v1682 = vsub.f32 0.0, %v1666
        %v1683 = vsub.f32 0.0, %v1667
        %v1684 = vsub.f32 0.0, %v1668
        %v1685 = vsub.f32 0.0, %v1669
        %v1686 = vsub.f32 0.0, %v1670
        %v1687 = vsub.f32 0.0, %v1671
        %v1688 = vsub.f32 0.0, %v1672
        %v1689 = vmul.f32 %v1681, 1.442695
        %v1690 = vpow.pop %v1689
        %v1691 = vmul.f32 %v1682, 1.442695
        %v1692 = vpow.pop %v1691
        %v1693 = vmul.f32 %v1683, 1.442695
        %v1694 = vpow.pop %v1693
        %v1695 = vmul.f32 %v1684, 1.442695
        %v1696 = vpow.pop %v1695
        %v1697 = vmul.f32 %v1685, 1.442695
        %v1698 = vpow.pop %v1697
        %v1699 = vmul.f32 %v1686, 1.442695
        %v1700 = vpow.pop %v1699
        %v1701 = vmul.f32 %v1687, 1.442695
        %v1702 = vpow.pop %v1701
        %v1703 = vmul.f32 %v1688, 1.442695
        %v1704 = vpow.pop %v1703
        %v1705 = vadd.f32 %v1690, 1.0
        %v1706 = vadd.f32 %v1692, 1.0
        %v1707 = vadd.f32 %v1694, 1.0
        %v1708 = vadd.f32 %v1696, 1.0
        %v1709 = vadd.f32 %v1698, 1.0
        %v1710 = vadd.f32 %v1700, 1.0
        %v1711 = vadd.f32 %v1702, 1.0
        %v1712 = vadd.f32 %v1704, 1.0
        %v1713 = vrcp.pop %v1705
        %v1714 = vmul.f32 1.0, %v1713
        %v1715 = vrcp.pop %v1706
        %v1716 = vmul.f32 1.0, %v1715
        %v1717 = vrcp.pop %v1707
        %v1718 = vmul.f32 1.0, %v1717
        %v1719 = vrcp.pop %v1708
        %v1720 = vmul.f32 1.0, %v1719
        %v1721 = vrcp.pop %v1709
        %v1722 = vmul.f32 1.0, %v1721
        %v1723 = vrcp.pop %v1710
        %v1724 = vmul.f32 1.0, %v1723
        %v1725 = vrcp.pop %v1711
        %v1726 = vmul.f32 1.0, %v1725
        %v1727 = vrcp.pop %v1712
        %v1728 = vmul.f32 1.0, %v1727
        %v1729 = vlog2.pop %v1714
        %v1730 = vmul.f32 %v1729, 0.6931472
        %v1731 = vlog2.pop %v1716
        %v1732 = vmul.f32 %v1731, 0.6931472
        %v1733 = vlog2.pop %v1718
        %v1734 = vmul.f32 %v1733, 0.6931472
        %v1735 = vlog2.pop %v1720
        %v1736 = vmul.f32 %v1735, 0.6931472
        %v1737 = vlog2.pop %v1722
        %v1738 = vmul.f32 %v1737, 0.6931472
        %v1739 = vlog2.pop %v1724
        %v1740 = vmul.f32 %v1739, 0.6931472
        %v1741 = vlog2.pop %v1726
        %v1742 = vmul.f32 %v1741, 0.6931472
        %v1743 = vlog2.pop %v1728
        %v1744 = vmul.f32 %v1743, 0.6931472
        %v1745 = vmax.f32 %v1730, -100.0
        %v1746 = vmax.f32 %v1732, -100.0
        %v1747 = vmax.f32 %v1734, -100.0
        %v1748 = vmax.f32 %v1736, -100.0
        %v1749 = vmax.f32 %v1738, -100.0
        %v1750 = vmax.f32 %v1740, -100.0
        %v1751 = vmax.f32 %v1742, -100.0
        %v1752 = vmax.f32 %v1744, -100.0
        %v1753 = vsub.f32 %v1730, %v1665
        %v1754 = vsub.f32 %v1732, %v1666
        %v1755 = vsub.f32 %v1734, %v1667
        %v1756 = vsub.f32 %v1736, %v1668
        %v1757 = vsub.f32 %v1738, %v1669
        %v1758 = vsub.f32 %v1740, %v1670
        %v1759 = vsub.f32 %v1742, %v1671
        %v1760 = vsub.f32 %v1744, %v1672
        %v1761 = vmax.f32 %v1753, -100.0
        %v1762 = vmax.f32 %v1754, -100.0
        %v1763 = vmax.f32 %v1755, -100.0
        %v1764 = vmax.f32 %v1756, -100.0
        %v1765 = vmax.f32 %v1757, -100.0
        %v1766 = vmax.f32 %v1758, -100.0
        %v1767 = vmax.f32 %v1759, -100.0
        %v1768 = vmax.f32 %v1760, -100.0
        %v1769 = vmul.f32 %v1634, %v1634
        %v1770 = vmul.f32 %v1636, %v1636
        %v1771 = vmul.f32 %v1638, %v1638
        %v1772 = vmul.f32 %v1640, %v1640
        %v1773 = vmul.f32 %v1642, %v1642
        %v1774 = vmul.f32 %v1644, %v1644
        %v1775 = vmul.f32 %v1646, %v1646
        %v1776 = vmul.f32 %v1648, %v1648
        %v1777 = vmul.f32 %v1769, %v1769
        %v1778 = vmul.f32 %v1770, %v1770
        %v1779 = vmul.f32 %v1771, %v1771
        %v1780 = vmul.f32 %v1772, %v1772
        %v1781 = vmul.f32 %v1773, %v1773
        %v1782 = vmul.f32 %v1774, %v1774
        %v1783 = vmul.f32 %v1775, %v1775
        %v1784 = vmul.f32 %v1776, %v1776
        %v1785 = vmul.f32 %v1617, -2.0
        %v1786 = vmul.f32 %v1618, -2.0
        %v1787 = vmul.f32 %v1619, -2.0
        %v1788 = vmul.f32 %v1620, -2.0
        %v1789 = vmul.f32 %v1621, -2.0
        %v1790 = vmul.f32 %v1622, -2.0
        %v1791 = vmul.f32 %v1623, -2.0
        %v1792 = vmul.f32 %v1624, -2.0
        %v1793 = vmul.f32 %v1785, 1.442695
        %v1794 = vpow.pop %v1793
        %v1795 = vmul.f32 %v1786, 1.442695
        %v1796 = vpow.pop %v1795
        %v1797 = vmul.f32 %v1787, 1.442695
        %v1798 = vpow.pop %v1797
        %v1799 = vmul.f32 %v1788, 1.442695
        %v1800 = vpow.pop %v1799
        %v1801 = vmul.f32 %v1789, 1.442695
        %v1802 = vpow.pop %v1801
        %v1803 = vmul.f32 %v1790, 1.442695
        %v1804 = vpow.pop %v1803
        %v1805 = vmul.f32 %v1791, 1.442695
        %v1806 = vpow.pop %v1805
        %v1807 = vmul.f32 %v1792, 1.442695
        %v1808 = vpow.pop %v1807
        %v1809 = vmul.f32 %v1285, %v887
        %v1810 = vmul.f32 %v1287, %v888
        %v1811 = vmul.f32 %v1289, %v889
        %v1812 = vmul.f32 %v1291, %v890
        %v1813 = vmul.f32 %v1293, %v891
        %v1814 = vmul.f32 %v1295, %v892
        %v1815 = vmul.f32 %v1297, %v893
        %v1816 = vmul.f32 %v1299, %v894
        %v1817 = vsub.f32 1.0, %v1285
        %v1818 = vsub.f32 1.0, %v1287
        %v1819 = vsub.f32 1.0, %v1289
        %v1820 = vsub.f32 1.0, %v1291
        %v1821 = vsub.f32 1.0, %v1293
        %v1822 = vsub.f32 1.0, %v1295
        %v1823 = vsub.f32 1.0, %v1297
        %v1824 = vsub.f32 1.0, %v1299
        %v1825 = vmul.f32 %v1817, %v903
        %v1826 = vmul.f32 %v1818, %v904
        %v1827 = vmul.f32 %v1819, %v905
        %v1828 = vmul.f32 %v1820, %v906
        %v1829 = vmul.f32 %v1821, %v907
        %v1830 = vmul.f32 %v1822, %v908
        %v1831 = vmul.f32 %v1823, %v909
        %v1832 = vmul.f32 %v1824, %v910
        %v1833 = vadd.f32 %v1809, %v1825
        %v1834 = vadd.f32 %v1810, %v1826
        %v1835 = vadd.f32 %v1811, %v1827
        %v1836 = vadd.f32 %v1812, %v1828
        %v1837 = vadd.f32 %v1813, %v1829
        %v1838 = vadd.f32 %v1814, %v1830
        %v1839 = vadd.f32 %v1815, %v1831
        %v1840 = vadd.f32 %v1816, %v1832
        %v1841 = vsub.f32 0.0, %v1833
        %v1842 = vsub.f32 0.0, %v1834
        %v1843 = vsub.f32 0.0, %v1835
        %v1844 = vsub.f32 0.0, %v1836
        %v1845 = vsub.f32 0.0, %v1837
        %v1846 = vsub.f32 0.0, %v1838
        %v1847 = vsub.f32 0.0, %v1839
        %v1848 = vsub.f32 0.0, %v1840
        %v1849 = vmul.f32 %v856, %v1316
        %v1850 = vmul.f32 %v858, %v1317
        %v1851 = vmul.f32 %v860, %v1318
        %v1852 = vmul.f32 %v862, %v1319
        %v1853 = vmul.f32 %v864, %v1320
        %v1854 = vmul.f32 %v866, %v1321
        %v1855 = vmul.f32 %v868, %v1322
        %v1856 = vmul.f32 %v870, %v1323
        %v1857 = vsub.f32 1.0, %v856
        %v1858 = vsub.f32 1.0, %v858
        %v1859 = vsub.f32 1.0, %v860
        %v1860 = vsub.f32 1.0, %v862
        %v1861 = vsub.f32 1.0, %v864
        %v1862 = vsub.f32 1.0, %v866
        %v1863 = vsub.f32 1.0, %v868
        %v1864 = vsub.f32 1.0, %v870
        %v1865 = vmul.f32 %v1857, %v1332
        %v1866 = vmul.f32 %v1858, %v1333
        %v1867 = vmul.f32 %v1859, %v1334
        %v1868 = vmul.f32 %v1860, %v1335
        %v1869 = vmul.f32 %v1861, %v1336
        %v1870 = vmul.f32 %v1862, %v1337
        %v1871 = vmul.f32 %v1863, %v1338
        %v1872 = vmul.f32 %v1864, %v1339
        %v1873 = vadd.f32 %v1849, %v1865
        %v1874 = vadd.f32 %v1850, %v1866
        %v1875 = vadd.f32 %v1851, %v1867
        %v1876 = vadd.f32 %v1852, %v1868
        %v1877 = vadd.f32 %v1853, %v1869
        %v1878 = vadd.f32 %v1854, %v1870
        %v1879 = vadd.f32 %v1855, %v1871
        %v1880 = vadd.f32 %v1856, %v1872
        %v1881 = vsub.f32 0.0, %v1873
        %v1882 = vsub.f32 0.0, %v1874
        %v1883 = vsub.f32 0.0, %v1875
        %v1884 = vsub.f32 0.0, %v1876
        %v1885 = vsub.f32 0.0, %v1877
        %v1886 = vsub.f32 0.0, %v1878
        %v1887 = vsub.f32 0.0, %v1879
        %v1888 = vsub.f32 0.0, %v1880
        %v1889 = vadd.f32 %v1841, %v1881
        %v1890 = vadd.f32 %v1842, %v1882
        %v1891 = vadd.f32 %v1843, %v1883
        %v1892 = vadd.f32 %v1844, %v1884
        %v1893 = vadd.f32 %v1845, %v1885
        %v1894 = vadd.f32 %v1846, %v1886
        %v1895 = vadd.f32 %v1847, %v1887
        %v1896 = vadd.f32 %v1848, %v1888
        %v1897 = vmul.f32 %v1714, %v887
        %v1898 = vmul.f32 %v1716, %v888
        %v1899 = vmul.f32 %v1718, %v889
        %v1900 = vmul.f32 %v1720, %v890
        %v1901 = vmul.f32 %v1722, %v891
        %v1902 = vmul.f32 %v1724, %v892
        %v1903 = vmul.f32 %v1726, %v893
        %v1904 = vmul.f32 %v1728, %v894
        %v1905 = vsub.f32 1.0, %v1714
        %v1906 = vsub.f32 1.0, %v1716
        %v1907 = vsub.f32 1.0, %v1718
        %v1908 = vsub.f32 1.0, %v1720
        %v1909 = vsub.f32 1.0, %v1722
        %v1910 = vsub.f32 1.0, %v1724
        %v1911 = vsub.f32 1.0, %v1726
        %v1912 = vsub.f32 1.0, %v1728
        %v1913 = vmul.f32 %v1905, %v903
        %v1914 = vmul.f32 %v1906, %v904
        %v1915 = vmul.f32 %v1907, %v905
        %v1916 = vmul.f32 %v1908, %v906
        %v1917 = vmul.f32 %v1909, %v907
        %v1918 = vmul.f32 %v1910, %v908
        %v1919 = vmul.f32 %v1911, %v909
        %v1920 = vmul.f32 %v1912, %v910
        %v1921 = vadd.f32 %v1897, %v1913
        %v1922 = vadd.f32 %v1898, %v1914
        %v1923 = vadd.f32 %v1899, %v1915
        %v1924 = vadd.f32 %v1900, %v1916
        %v1925 = vadd.f32 %v1901, %v1917
        %v1926 = vadd.f32 %v1902, %v1918
        %v1927 = vadd.f32 %v1903, %v1919
        %v1928 = vadd.f32 %v1904, %v1920
        %v1929 = vsub.f32 0.0, %v1921
        %v1930 = vsub.f32 0.0, %v1922
        %v1931 = vsub.f32 0.0, %v1923
        %v1932 = vsub.f32 0.0, %v1924
        %v1933 = vsub.f32 0.0, %v1925
        %v1934 = vsub.f32 0.0, %v1926
        %v1935 = vsub.f32 0.0, %v1927
        %v1936 = vsub.f32 0.0, %v1928
        %v1937 = vadd.f32 %v1889, %v1929
        %v1938 = vadd.f32 %v1890, %v1930
        %v1939 = vadd.f32 %v1891, %v1931
        %v1940 = vadd.f32 %v1892, %v1932
        %v1941 = vadd.f32 %v1893, %v1933
        %v1942 = vadd.f32 %v1894, %v1934
        %v1943 = vadd.f32 %v1895, %v1935
        %v1944 = vadd.f32 %v1896, %v1936
        %v1945 = vmul.f32 %v856, %v1745
        %v1946 = vmul.f32 %v858, %v1746
        %v1947 = vmul.f32 %v860, %v1747
        %v1948 = vmul.f32 %v862, %v1748
        %v1949 = vmul.f32 %v864, %v1749
        %v1950 = vmul.f32 %v866, %v1750
        %v1951 = vmul.f32 %v868, %v1751
        %v1952 = vmul.f32 %v870, %v1752
        %v1953 = vmul.f32 %v1857, %v1761
        %v1954 = vmul.f32 %v1858, %v1762
        %v1955 = vmul.f32 %v1859, %v1763
        %v1956 = vmul.f32 %v1860, %v1764
        %v1957 = vmul.f32 %v1861, %v1765
        %v1958 = vmul.f32 %v1862, %v1766
        %v1959 = vmul.f32 %v1863, %v1767
        %v1960 = vmul.f32 %v1864, %v1768
        %v1961 = vadd.f32 %v1945, %v1953
        %v1962 = vadd.f32 %v1946, %v1954
        %v1963 = vadd.f32 %v1947, %v1955
        %v1964 = vadd.f32 %v1948, %v1956
        %v1965 = vadd.f32 %v1949, %v1957
        %v1966 = vadd.f32 %v1950, %v1958
        %v1967 = vadd.f32 %v1951, %v1959
        %v1968 = vadd.f32 %v1952, %v1960
        %v1969 = vsub.f32 0.0, %v1961
        %v1970 = vsub.f32 0.0, %v1962
        %v1971 = vsub.f32 0.0, %v1963
        %v1972 = vsub.f32 0.0, %v1964
        %v1973 = vsub.f32 0.0, %v1965
        %v1974 = vsub.f32 0.0, %v1966
        %v1975 = vsub.f32 0.0, %v1967
        %v1976 = vsub.f32 0.0, %v1968
        %v1977 = vadd.f32 %v1937, %v1969
        %v1978 = vadd.f32 %v1938, %v1970
        %v1979 = vadd.f32 %v1939, %v1971
        %v1980 = vadd.f32 %v1940, %v1972
        %v1981 = vadd.f32 %v1941, %v1973
        %v1982 = vadd.f32 %v1942, %v1974
        %v1983 = vadd.f32 %v1943, %v1975
        %v1984 = vadd.f32 %v1944, %v1976
        %v1985 = vmul.f32 %v1714, %v1316
        %v1986 = vmul.f32 %v1716, %v1317
        %v1987 = vmul.f32 %v1718, %v1318
        %v1988 = vmul.f32 %v1720, %v1319
        %v1989 = vmul.f32 %v1722, %v1320
        %v1990 = vmul.f32 %v1724, %v1321
        %v1991 = vmul.f32 %v1726, %v1322
        %v1992 = vmul.f32 %v1728, %v1323
        %v1993 = vmul.f32 %v1905, %v1332
        %v1994 = vmul.f32 %v1906, %v1333
        %v1995 = vmul.f32 %v1907, %v1334
        %v1996 = vmul.f32 %v1908, %v1335
        %v1997 = vmul.f32 %v1909, %v1336
        %v1998 = vmul.f32 %v1910, %v1337
        %v1999 = vmul.f32 %v1911, %v1338
        %v2000 = vmul.f32 %v1912, %v1339
        %v2001 = vadd.f32 %v1985, %v1993
        %v2002 = vadd.f32 %v1986, %v1994
        %v2003 = vadd.f32 %v1987, %v1995
        %v2004 = vadd.f32 %v1988, %v1996
        %v2005 = vadd.f32 %v1989, %v1997
        %v2006 = vadd.f32 %v1990, %v1998
        %v2007 = vadd.f32 %v1991, %v1999
        %v2008 = vadd.f32 %v1992, %v2000
        %v2009 = vsub.f32 0.0, %v2001
        %v2010 = vsub.f32 0.0, %v2002
        %v2011 = vsub.f32 0.0, %v2003
        %v2012 = vsub.f32 0.0, %v2004
        %v2013 = vsub.f32 0.0, %v2005
        %v2014 = vsub.f32 0.0, %v2006
        %v2015 = vsub.f32 0.0, %v2007
        %v2016 = vsub.f32 0.0, %v2008
        %v2017 = vadd.f32 %v1977, %v2009
        %v2018 = vadd.f32 %v1978, %v2010
        %v2019 = vadd.f32 %v1979, %v2011
        %v2020 = vadd.f32 %v1980, %v2012
        %v2021 = vadd.f32 %v1981, %v2013
        %v2022 = vadd.f32 %v1982, %v2014
        %v2023 = vadd.f32 %v1983, %v2015
        %v2024 = vadd.f32 %v1984, %v2016
        %v2025 = vmul.f32 %v1285, %v1745
        %v2026 = vmul.f32 %v1287, %v1746
        %v2027 = vmul.f32 %v1289, %v1747
        %v2028 = vmul.f32 %v1291, %v1748
        %v2029 = vmul.f32 %v1293, %v1749
        %v2030 = vmul.f32 %v1295, %v1750
        %v2031 = vmul.f32 %v1297, %v1751
        %v2032 = vmul.f32 %v1299, %v1752
        %v2033 = vmul.f32 %v1817, %v1761
        %v2034 = vmul.f32 %v1818, %v1762
        %v2035 = vmul.f32 %v1819, %v1763
        %v2036 = vmul.f32 %v1820, %v1764
        %v2037 = vmul.f32 %v1821, %v1765
        %v2038 = vmul.f32 %v1822, %v1766
        %v2039 = vmul.f32 %v1823, %v1767
        %v2040 = vmul.f32 %v1824, %v1768
        %v2041 = vadd.f32 %v2025, %v2033
        %v2042 = vadd.f32 %v2026, %v2034
        %v2043 = vadd.f32 %v2027, %v2035
        %v2044 = vadd.f32 %v2028, %v2036
        %v2045 = vadd.f32 %v2029, %v2037
        %v2046 = vadd.f32 %v2030, %v2038
        %v2047 = vadd.f32 %v2031, %v2039
        %v2048 = vadd.f32 %v2032, %v2040
        %v2049 = vsub.f32 0.0, %v2041
        %v2050 = vsub.f32 0.0, %v2042
        %v2051 = vsub.f32 0.0, %v2043
        %v2052 = vsub.f32 0.0, %v2044
        %v2053 = vsub.f32 0.0, %v2045
        %v2054 = vsub.f32 0.0, %v2046
        %v2055 = vsub.f32 0.0, %v2047
        %v2056 = vsub.f32 0.0, %v2048
        %v2057 = vadd.f32 %v2017, %v2049
        %v2058 = vadd.f32 %v2018, %v2050
        %v2059 = vadd.f32 %v2019, %v2051
        %v2060 = vadd.f32 %v2020, %v2052
        %v2061 = vadd.f32 %v2021, %v2053
        %v2062 = vadd.f32 %v2022, %v2054
        %v2063 = vadd.f32 %v2023, %v2055
        %v2064 = vadd.f32 %v2024, %v2056
        %v2065 = vsub.f32 %v751, %v1180
        %v2066 = vsub.f32 %v752, %v1181
        %v2067 = vsub.f32 %v753, %v1182
        %v2068 = vsub.f32 %v754, %v1183
        %v2069 = vsub.f32 %v755, %v1184
        %v2070 = vsub.f32 %v756, %v1185
        %v2071 = vsub.f32 %v757, %v1186
        %v2072 = vsub.f32 %v758, %v1187
        %v2073 = vsub.f32 %v1188, %v759
        %v2074 = vsub.f32 %v1189, %v760
        %v2075 = vsub.f32 %v1190, %v761
        %v2076 = vsub.f32 %v1191, %v762
        %v2077 = vsub.f32 %v1192, %v763
        %v2078 = vsub.f32 %v1193, %v764
        %v2079 = vsub.f32 %v1194, %v765
        %v2080 = vsub.f32 %v1195, %v766
        %v2081 = vmul.f32 %v2065, %v2065
        %v2082 = vmul.f32 %v2066, %v2066
        %v2083 = vmul.f32 %v2067, %v2067
        %v2084 = vmul.f32 %v2068, %v2068
        %v2085 = vmul.f32 %v2069, %v2069
        %v2086 = vmul.f32 %v2070, %v2070
        %v2087 = vmul.f32 %v2071, %v2071
        %v2088 = vmul.f32 %v2072, %v2072
        %v2089 = vadd.f32 %v919, %v2081
        %v2090 = vadd.f32 %v920, %v2082
        %v2091 = vadd.f32 %v921, %v2083
        %v2092 = vadd.f32 %v922, %v2084
        %v2093 = vadd.f32 %v923, %v2085
        %v2094 = vadd.f32 %v924, %v2086
        %v2095 = vadd.f32 %v925, %v2087
        %v2096 = vadd.f32 %v926, %v2088
        %v2097 = vmul.f32 %v2089, 0.5
        %v2098 = vmul.f32 %v2090, 0.5
        %v2099 = vmul.f32 %v2091, 0.5
        %v2100 = vmul.f32 %v2092, 0.5
        %v2101 = vmul.f32 %v2093, 0.5
        %v2102 = vmul.f32 %v2094, 0.5
        %v2103 = vmul.f32 %v2095, 0.5
        %v2104 = vmul.f32 %v2096, 0.5
        %v2105 = vmul.f32 %v2097, %v1365
        %v2106 = vmul.f32 %v2098, %v1367
        %v2107 = vmul.f32 %v2099, %v1369
        %v2108 = vmul.f32 %v2100, %v1371
        %v2109 = vmul.f32 %v2101, %v1373
        %v2110 = vmul.f32 %v2102, %v1375
        %v2111 = vmul.f32 %v2103, %v1377
        %v2112 = vmul.f32 %v2104, %v1379
        %v2113 = vadd.f32 %v2073, %v2105
        %v2114 = vadd.f32 %v2074, %v2106
        %v2115 = vadd.f32 %v2075, %v2107
        %v2116 = vadd.f32 %v2076, %v2108
        %v2117 = vadd.f32 %v2077, %v2109
        %v2118 = vadd.f32 %v2078, %v2110
        %v2119 = vadd.f32 %v2079, %v2111
        %v2120 = vadd.f32 %v2080, %v2112
        %v2121 = vsub.f32 %v2113, 0.5
        %v2122 = vsub.f32 %v2114, 0.5
        %v2123 = vsub.f32 %v2115, 0.5
        %v2124 = vsub.f32 %v2116, 0.5
        %v2125 = vsub.f32 %v2117, 0.5
        %v2126 = vsub.f32 %v2118, 0.5
        %v2127 = vsub.f32 %v2119, 0.5
        %v2128 = vsub.f32 %v2120, 0.5
        %v2129 = vsub.f32 %v1180, %v751
        %v2130 = vsub.f32 %v1181, %v752
        %v2131 = vsub.f32 %v1182, %v753
        %v2132 = vsub.f32 %v1183, %v754
        %v2133 = vsub.f32 %v1184, %v755
        %v2134 = vsub.f32 %v1185, %v756
        %v2135 = vsub.f32 %v1186, %v757
        %v2136 = vsub.f32 %v1187, %v758
        %v2137 = vsub.f32 %v759, %v1188
        %v2138 = vsub.f32 %v760, %v1189
        %v2139 = vsub.f32 %v761, %v1190
        %v2140 = vsub.f32 %v762, %v1191
        %v2141 = vsub.f32 %v763, %v1192
        %v2142 = vsub.f32 %v764, %v1193
        %v2143 = vsub.f32 %v765, %v1194
        %v2144 = vsub.f32 %v766, %v1195
        %v2145 = vmul.f32 %v2129, %v2129
        %v2146 = vmul.f32 %v2130, %v2130
        %v2147 = vmul.f32 %v2131, %v2131
        %v2148 = vmul.f32 %v2132, %v2132
        %v2149 = vmul.f32 %v2133, %v2133
        %v2150 = vmul.f32 %v2134, %v2134
        %v2151 = vmul.f32 %v2135, %v2135
        %v2152 = vmul.f32 %v2136, %v2136
        %v2153 = vadd.f32 %v1348, %v2145
        %v2154 = vadd.f32 %v1349, %v2146
        %v2155 = vadd.f32 %v1350, %v2147
        %v2156 = vadd.f32 %v1351, %v2148
        %v2157 = vadd.f32 %v1352, %v2149
        %v2158 = vadd.f32 %v1353, %v2150
        %v2159 = vadd.f32 %v1354, %v2151
        %v2160 = vadd.f32 %v1355, %v2152
        %v2161 = vmul.f32 %v2153, 0.5
        %v2162 = vmul.f32 %v2154, 0.5
        %v2163 = vmul.f32 %v2155, 0.5
        %v2164 = vmul.f32 %v2156, 0.5
        %v2165 = vmul.f32 %v2157, 0.5
        %v2166 = vmul.f32 %v2158, 0.5
        %v2167 = vmul.f32 %v2159, 0.5
        %v2168 = vmul.f32 %v2160, 0.5
        %v2169 = vmul.f32 %v2161, %v936
        %v2170 = vmul.f32 %v2162, %v938
        %v2171 = vmul.f32 %v2163, %v940
        %v2172 = vmul.f32 %v2164, %v942
        %v2173 = vmul.f32 %v2165, %v944
        %v2174 = vmul.f32 %v2166, %v946
        %v2175 = vmul.f32 %v2167, %v948
        %v2176 = vmul.f32 %v2168, %v950
        %v2177 = vadd.f32 %v2137, %v2169
        %v2178 = vadd.f32 %v2138, %v2170
        %v2179 = vadd.f32 %v2139, %v2171
        %v2180 = vadd.f32 %v2140, %v2172
        %v2181 = vadd.f32 %v2141, %v2173
        %v2182 = vadd.f32 %v2142, %v2174
        %v2183 = vadd.f32 %v2143, %v2175
        %v2184 = vadd.f32 %v2144, %v2176
        %v2185 = vsub.f32 %v2177, 0.5
        %v2186 = vsub.f32 %v2178, 0.5
        %v2187 = vsub.f32 %v2179, 0.5
        %v2188 = vsub.f32 %v2180, 0.5
        %v2189 = vsub.f32 %v2181, 0.5
        %v2190 = vsub.f32 %v2182, 0.5
        %v2191 = vsub.f32 %v2183, 0.5
        %v2192 = vsub.f32 %v2184, 0.5
        %v2193 = vadd.f32 %v2121, %v2185
        %v2194 = vadd.f32 %v2122, %v2186
        %v2195 = vadd.f32 %v2123, %v2187
        %v2196 = vadd.f32 %v2124, %v2188
        %v2197 = vadd.f32 %v2125, %v2189
        %v2198 = vadd.f32 %v2126, %v2190
        %v2199 = vadd.f32 %v2127, %v2191
        %v2200 = vadd.f32 %v2128, %v2192
        %v2201 = vsub.f32 %v1609, %v1180
        %v2202 = vsub.f32 %v1610, %v1181
        %v2203 = vsub.f32 %v1611, %v1182
        %v2204 = vsub.f32 %v1612, %v1183
        %v2205 = vsub.f32 %v1613, %v1184
        %v2206 = vsub.f32 %v1614, %v1185
        %v2207 = vsub.f32 %v1615, %v1186
        %v2208 = vsub.f32 %v1616, %v1187
        %v2209 = vsub.f32 %v1188, %v1617
        %v2210 = vsub.f32 %v1189, %v1618
        %v2211 = vsub.f32 %v1190, %v1619
        %v2212 = vsub.f32 %v1191, %v1620
        %v2213 = vsub.f32 %v1192, %v1621
        %v2214 = vsub.f32 %v1193, %v1622
        %v2215 = vsub.f32 %v1194, %v1623
        %v2216 = vsub.f32 %v1195, %v1624
        %v2217 = vmul.f32 %v2201, %v2201
        %v2218 = vmul.f32 %v2202, %v2202
        %v2219 = vmul.f32 %v2203, %v2203
        %v2220 = vmul.f32 %v2204, %v2204
        %v2221 = vmul.f32 %v2205, %v2205
        %v2222 = vmul.f32 %v2206, %v2206
        %v2223 = vmul.f32 %v2207, %v2207
        %v2224 = vmul.f32 %v2208, %v2208
        %v2225 = vadd.f32 %v1777, %v2217
        %v2226 = vadd.f32 %v1778, %v2218
        %v2227 = vadd.f32 %v1779, %v2219
        %v2228 = vadd.f32 %v1780, %v2220
        %v2229 = vadd.f32 %v1781, %v2221
        %v2230 = vadd.f32 %v1782, %v2222
        %v2231 = vadd.f32 %v1783, %v2223
        %v2232 = vadd.f32 %v1784, %v2224
        %v2233 = vmul.f32 %v2225, 0.5
        %v2234 = vmul.f32 %v2226, 0.5
        %v2235 = vmul.f32 %v2227, 0.5
        %v2236 = vmul.f32 %v2228, 0.5
        %v2237 = vmul.f32 %v2229, 0.5
        %v2238 = vmul.f32 %v2230, 0.5
        %v2239 = vmul.f32 %v2231, 0.5
        %v2240 = vmul.f32 %v2232, 0.5
        %v2241 = vmul.f32 %v2233, %v1365
        %v2242 = vmul.f32 %v2234, %v1367
        %v2243 = vmul.f32 %v2235, %v1369
        %v2244 = vmul.f32 %v2236, %v1371
        %v2245 = vmul.f32 %v2237, %v1373
        %v2246 = vmul.f32 %v2238, %v1375
        %v2247 = vmul.f32 %v2239, %v1377
        %v2248 = vmul.f32 %v2240, %v1379
        %v2249 = vadd.f32 %v2209, %v2241
        %v2250 = vadd.f32 %v2210, %v2242
        %v2251 = vadd.f32 %v2211, %v2243
        %v2252 = vadd.f32 %v2212, %v2244
        %v2253 = vadd.f32 %v2213, %v2245
        %v2254 = vadd.f32 %v2214, %v2246
        %v2255 = vadd.f32 %v2215, %v2247
        %v2256 = vadd.f32 %v2216, %v2248
        %v2257 = vsub.f32 %v2249, 0.5
        %v2258 = vsub.f32 %v2250, 0.5
        %v2259 = vsub.f32 %v2251, 0.5
        %v2260 = vsub.f32 %v2252, 0.5
        %v2261 = vsub.f32 %v2253, 0.5
        %v2262 = vsub.f32 %v2254, 0.5
        %v2263 = vsub.f32 %v2255, 0.5
        %v2264 = vsub.f32 %v2256, 0.5
        %v2265 = vadd.f32 %v2193, %v2257
        %v2266 = vadd.f32 %v2194, %v2258
        %v2267 = vadd.f32 %v2195, %v2259
        %v2268 = vadd.f32 %v2196, %v2260
        %v2269 = vadd.f32 %v2197, %v2261
        %v2270 = vadd.f32 %v2198, %v2262
        %v2271 = vadd.f32 %v2199, %v2263
        %v2272 = vadd.f32 %v2200, %v2264
        %v2273 = vsub.f32 %v1180, %v1609
        %v2274 = vsub.f32 %v1181, %v1610
        %v2275 = vsub.f32 %v1182, %v1611
        %v2276 = vsub.f32 %v1183, %v1612
        %v2277 = vsub.f32 %v1184, %v1613
        %v2278 = vsub.f32 %v1185, %v1614
        %v2279 = vsub.f32 %v1186, %v1615
        %v2280 = vsub.f32 %v1187, %v1616
        %v2281 = vsub.f32 %v1617, %v1188
        %v2282 = vsub.f32 %v1618, %v1189
        %v2283 = vsub.f32 %v1619, %v1190
        %v2284 = vsub.f32 %v1620, %v1191
        %v2285 = vsub.f32 %v1621, %v1192
        %v2286 = vsub.f32 %v1622, %v1193
        %v2287 = vsub.f32 %v1623, %v1194
        %v2288 = vsub.f32 %v1624, %v1195
        %v2289 = vmul.f32 %v2273, %v2273
        %v2290 = vmul.f32 %v2274, %v2274
        %v2291 = vmul.f32 %v2275, %v2275
        %v2292 = vmul.f32 %v2276, %v2276
        %v2293 = vmul.f32 %v2277, %v2277
        %v2294 = vmul.f32 %v2278, %v2278
        %v2295 = vmul.f32 %v2279, %v2279
        %v2296 = vmul.f32 %v2280, %v2280
        %v2297 = vadd.f32 %v1348, %v2289
        %v2298 = vadd.f32 %v1349, %v2290
        %v2299 = vadd.f32 %v1350, %v2291
        %v2300 = vadd.f32 %v1351, %v2292
        %v2301 = vadd.f32 %v1352, %v2293
        %v2302 = vadd.f32 %v1353, %v2294
        %v2303 = vadd.f32 %v1354, %v2295
        %v2304 = vadd.f32 %v1355, %v2296
        %v2305 = vmul.f32 %v2297, 0.5
        %v2306 = vmul.f32 %v2298, 0.5
        %v2307 = vmul.f32 %v2299, 0.5
        %v2308 = vmul.f32 %v2300, 0.5
        %v2309 = vmul.f32 %v2301, 0.5
        %v2310 = vmul.f32 %v2302, 0.5
        %v2311 = vmul.f32 %v2303, 0.5
        %v2312 = vmul.f32 %v2304, 0.5
        %v2313 = vmul.f32 %v2305, %v1794
        %v2314 = vmul.f32 %v2306, %v1796
        %v2315 = vmul.f32 %v2307, %v1798
        %v2316 = vmul.f32 %v2308, %v1800
        %v2317 = vmul.f32 %v2309, %v1802
        %v2318 = vmul.f32 %v2310, %v1804
        %v2319 = vmul.f32 %v2311, %v1806
        %v2320 = vmul.f32 %v2312, %v1808
        %v2321 = vadd.f32 %v2281, %v2313
        %v2322 = vadd.f32 %v2282, %v2314
        %v2323 = vadd.f32 %v2283, %v2315
        %v2324 = vadd.f32 %v2284, %v2316
        %v2325 = vadd.f32 %v2285, %v2317
        %v2326 = vadd.f32 %v2286, %v2318
        %v2327 = vadd.f32 %v2287, %v2319
        %v2328 = vadd.f32 %v2288, %v2320
        %v2329 = vsub.f32 %v2321, 0.5
        %v2330 = vsub.f32 %v2322, 0.5
        %v2331 = vsub.f32 %v2323, 0.5
        %v2332 = vsub.f32 %v2324, 0.5
        %v2333 = vsub.f32 %v2325, 0.5
        %v2334 = vsub.f32 %v2326, 0.5
        %v2335 = vsub.f32 %v2327, 0.5
        %v2336 = vsub.f32 %v2328, 0.5
        %v2337 = vadd.f32 %v2265, %v2329
        %v2338 = vadd.f32 %v2266, %v2330
        %v2339 = vadd.f32 %v2267, %v2331
        %v2340 = vadd.f32 %v2268, %v2332
        %v2341 = vadd.f32 %v2269, %v2333
        %v2342 = vadd.f32 %v2270, %v2334
        %v2343 = vadd.f32 %v2271, %v2335
        %v2344 = vadd.f32 %v2272, %v2336
        %v2345 = vsub.f32 %v751, %v1609
        %v2346 = vsub.f32 %v752, %v1610
        %v2347 = vsub.f32 %v753, %v1611
        %v2348 = vsub.f32 %v754, %v1612
        %v2349 = vsub.f32 %v755, %v1613
        %v2350 = vsub.f32 %v756, %v1614
        %v2351 = vsub.f32 %v757, %v1615
        %v2352 = vsub.f32 %v758, %v1616
        %v2353 = vsub.f32 %v1617, %v759
        %v2354 = vsub.f32 %v1618, %v760
        %v2355 = vsub.f32 %v1619, %v761
        %v2356 = vsub.f32 %v1620, %v762
        %v2357 = vsub.f32 %v1621, %v763
        %v2358 = vsub.f32 %v1622, %v764
        %v2359 = vsub.f32 %v1623, %v765
        %v2360 = vsub.f32 %v1624, %v766
        %v2361 = vmul.f32 %v2345, %v2345
        %v2362 = vmul.f32 %v2346, %v2346
        %v2363 = vmul.f32 %v2347, %v2347
        %v2364 = vmul.f32 %v2348, %v2348
        %v2365 = vmul.f32 %v2349, %v2349
        %v2366 = vmul.f32 %v2350, %v2350
        %v2367 = vmul.f32 %v2351, %v2351
        %v2368 = vmul.f32 %v2352, %v2352
        %v2369 = vadd.f32 %v919, %v2361
        %v2370 = vadd.f32 %v920, %v2362
        %v2371 = vadd.f32 %v921, %v2363
        %v2372 = vadd.f32 %v922, %v2364
        %v2373 = vadd.f32 %v923, %v2365
        %v2374 = vadd.f32 %v924, %v2366
        %v2375 = vadd.f32 %v925, %v2367
        %v2376 = vadd.f32 %v926, %v2368
        %v2377 = vmul.f32 %v2369, 0.5
        %v2378 = vmul.f32 %v2370, 0.5
        %v2379 = vmul.f32 %v2371, 0.5
        %v2380 = vmul.f32 %v2372, 0.5
        %v2381 = vmul.f32 %v2373, 0.5
        %v2382 = vmul.f32 %v2374, 0.5
        %v2383 = vmul.f32 %v2375, 0.5
        %v2384 = vmul.f32 %v2376, 0.5
        %v2385 = vmul.f32 %v2377, %v1794
        %v2386 = vmul.f32 %v2378, %v1796
        %v2387 = vmul.f32 %v2379, %v1798
        %v2388 = vmul.f32 %v2380, %v1800
        %v2389 = vmul.f32 %v2381, %v1802
        %v2390 = vmul.f32 %v2382, %v1804
        %v2391 = vmul.f32 %v2383, %v1806
        %v2392 = vmul.f32 %v2384, %v1808
        %v2393 = vadd.f32 %v2353, %v2385
        %v2394 = vadd.f32 %v2354, %v2386
        %v2395 = vadd.f32 %v2355, %v2387
        %v2396 = vadd.f32 %v2356, %v2388
        %v2397 = vadd.f32 %v2357, %v2389
        %v2398 = vadd.f32 %v2358, %v2390
        %v2399 = vadd.f32 %v2359, %v2391
        %v2400 = vadd.f32 %v2360, %v2392
        %v2401 = vsub.f32 %v2393, 0.5
        %v2402 = vsub.f32 %v2394, 0.5
        %v2403 = vsub.f32 %v2395, 0.5
        %v2404 = vsub.f32 %v2396, 0.5
        %v2405 = vsub.f32 %v2397, 0.5
        %v2406 = vsub.f32 %v2398, 0.5
        %v2407 = vsub.f32 %v2399, 0.5
        %v2408 = vsub.f32 %v2400, 0.5
        %v2409 = vadd.f32 %v2337, %v2401
        %v2410 = vadd.f32 %v2338, %v2402
        %v2411 = vadd.f32 %v2339, %v2403
        %v2412 = vadd.f32 %v2340, %v2404
        %v2413 = vadd.f32 %v2341, %v2405
        %v2414 = vadd.f32 %v2342, %v2406
        %v2415 = vadd.f32 %v2343, %v2407
        %v2416 = vadd.f32 %v2344, %v2408
        %v2417 = vsub.f32 %v1609, %v751
        %v2418 = vsub.f32 %v1610, %v752
        %v2419 = vsub.f32 %v1611, %v753
        %v2420 = vsub.f32 %v1612, %v754
        %v2421 = vsub.f32 %v1613, %v755
        %v2422 = vsub.f32 %v1614, %v756
        %v2423 = vsub.f32 %v1615, %v757
        %v2424 = vsub.f32 %v1616, %v758
        %v2425 = vsub.f32 %v759, %v1617
        %v2426 = vsub.f32 %v760, %v1618
        %v2427 = vsub.f32 %v761, %v1619
        %v2428 = vsub.f32 %v762, %v1620
        %v2429 = vsub.f32 %v763, %v1621
        %v2430 = vsub.f32 %v764, %v1622
        %v2431 = vsub.f32 %v765, %v1623
        %v2432 = vsub.f32 %v766, %v1624
        %v2433 = vmul.f32 %v2417, %v2417
        %v2434 = vmul.f32 %v2418, %v2418
        %v2435 = vmul.f32 %v2419, %v2419
        %v2436 = vmul.f32 %v2420, %v2420
        %v2437 = vmul.f32 %v2421, %v2421
        %v2438 = vmul.f32 %v2422, %v2422
        %v2439 = vmul.f32 %v2423, %v2423
        %v2440 = vmul.f32 %v2424, %v2424
        %v2441 = vadd.f32 %v1777, %v2433
        %v2442 = vadd.f32 %v1778, %v2434
        %v2443 = vadd.f32 %v1779, %v2435
        %v2444 = vadd.f32 %v1780, %v2436
        %v2445 = vadd.f32 %v1781, %v2437
        %v2446 = vadd.f32 %v1782, %v2438
        %v2447 = vadd.f32 %v1783, %v2439
        %v2448 = vadd.f32 %v1784, %v2440
        %v2449 = vmul.f32 %v2441, 0.5
        %v2450 = vmul.f32 %v2442, 0.5
        %v2451 = vmul.f32 %v2443, 0.5
        %v2452 = vmul.f32 %v2444, 0.5
        %v2453 = vmul.f32 %v2445, 0.5
        %v2454 = vmul.f32 %v2446, 0.5
        %v2455 = vmul.f32 %v2447, 0.5
        %v2456 = vmul.f32 %v2448, 0.5
        %v2457 = vmul.f32 %v2449, %v936
        %v2458 = vmul.f32 %v2450, %v938
        %v2459 = vmul.f32 %v2451, %v940
        %v2460 = vmul.f32 %v2452, %v942
        %v2461 = vmul.f32 %v2453, %v944
        %v2462 = vmul.f32 %v2454, %v946
        %v2463 = vmul.f32 %v2455, %v948
        %v2464 = vmul.f32 %v2456, %v950
        %v2465 = vadd.f32 %v2425, %v2457
        %v2466 = vadd.f32 %v2426, %v2458
        %v2467 = vadd.f32 %v2427, %v2459
        %v2468 = vadd.f32 %v2428, %v2460
        %v2469 = vadd.f32 %v2429, %v2461
        %v2470 = vadd.f32 %v2430, %v2462
        %v2471 = vadd.f32 %v2431, %v2463
        %v2472 = vadd.f32 %v2432, %v2464
        %v2473 = vsub.f32 %v2465, 0.5
        %v2474 = vsub.f32 %v2466, 0.5
        %v2475 = vsub.f32 %v2467, 0.5
        %v2476 = vsub.f32 %v2468, 0.5
        %v2477 = vsub.f32 %v2469, 0.5
        %v2478 = vsub.f32 %v2470, 0.5
        %v2479 = vsub.f32 %v2471, 0.5
        %v2480 = vsub.f32 %v2472, 0.5
        %v2481 = vadd.f32 %v2409, %v2473
        %v2482 = vadd.f32 %v2410, %v2474
        %v2483 = vadd.f32 %v2411, %v2475
        %v2484 = vadd.f32 %v2412, %v2476
        %v2485 = vadd.f32 %v2413, %v2477
        %v2486 = vadd.f32 %v2414, %v2478
        %v2487 = vadd.f32 %v2415, %v2479
        %v2488 = vadd.f32 %v2416, %v2480
        %v2489 = vadd.f32 %v2057, %v2058
        %v2490 = vadd.f32 %v2489, %v2059
        %v2491 = vadd.f32 %v2490, %v2060
        %v2492 = vadd.f32 %v2491, %v2061
        %v2493 = vadd.f32 %v2492, %v2062
        %v2494 = vadd.f32 %v2493, %v2063
        %v2495 = vadd.f32 %v2494, %v2064
        %2496 = vadd.xlane.f32.xlu0 %v2495
        %v2497 = vpop.xlane.xlu0 %2496
        %v2498 = vrot.slane %v2497, 4
        %v2499 = vadd.f32 %v2497, %v2498
        %v2500 = vrot.slane %v2499, 2
        %v2501 = vadd.f32 %v2499, %v2500
        %v2502 = vrot.slane %v2501, 1
        %v2503 = vadd.f32 %v2501, %v2502
        %s2504 = vtos %v2503
        %v2505 = vadd.f32 %v2481, %v2482
        %v2506 = vadd.f32 %v2505, %v2483
        %v2507 = vadd.f32 %v2506, %v2484
        %v2508 = vadd.f32 %v2507, %v2485
        %v2509 = vadd.f32 %v2508, %v2486
        %v2510 = vadd.f32 %v2509, %v2487
        %v2511 = vadd.f32 %v2510, %v2488
        %2512 = vadd.xlane.f32.xlu0 %v2511
        %v2513 = vpop.xlane.xlu0 %2512
        %v2514 = vrot.slane %v2513, 4
        %v2515 = vadd.f32 %v2513, %v2514
        %v2516 = vrot.slane %v2515, 2
        %v2517 = vadd.f32 %v2515, %v2516
        %v2518 = vrot.slane %v2517, 1
        %v2519 = vadd.f32 %v2517, %v2518
        %s2520 = vtos %v2519
        %v2521 = vlaneseq
        %v2522 = vshrl.u32 %v2521, 7
        %vm2523 = vcmp.lt.s32.totalorder %v2522, 4
        %v2524 = vstv %s2504
        %v2525 = vstv %s2520
        %v2526 = vsel %vm2523, %v2524, %v2525
        %2527 = vst [vmem:[%s496] sm:$0xff] %v2526
        %s2528 = sand.u32 %s214, 1
        %s2529 = scalar_lea.sflag [#allocation6], %s2528
        %s2530 = sand.u32 %s214, 1
        %s2531 = smul.addr %s2530, 64
        %s2532 = scalar_lea.vmem [#allocation9], %s2531
        %s2533 = sand.u32 %s38, 1
        %s2534 = scalar_lea.sflag [#allocation11], %s2533
        %s2535 = sand.u32 %s242, 1
        %s2536 = smul.addr %s2535, 64
        %s2537 = scalar_lea.vmem [#allocation10], %s2536
        %s2538 = sand.u32 %s38, 1
        %s2539 = scalar_lea.sflag [#allocation11], %s2538
        %s2540 = sand.u32 %s270, 1
        %s2541 = smul.addr %s2540, 64
        %s2542 = scalar_lea.vmem [#allocation12], %s2541
        %s2543 = sand.u32 %s298, 1
        %s2544 = scalar_lea.sflag [#allocation14], %s2543
        %s2545 = sand.u32 %s298, 1
        %s2546 = smul.addr %s2545, 8
        %s2547 = scalar_lea.vmem [#allocation13], %s2546
        // Predicated region
        $region53: #{tpu_custom_call.1} parent=43 // pred_check
          %p2548 = pneg %p224
        $region54: #{tpu_custom_call.1} parent=43 // pred_check_branch
          %2550 = sbr.rel (%p2548) target = $region56
        $region55: #{tpu_custom_call.1} parent=43 // pred_region
          %s2551 = smul.u32 2, %s43
          %s2553 = ssub.s32 1024, 1024
          %2554 = vsyncadd %s2529, %s2553
          %s2555 = smul.addr %s42, 8
          %s2556 = sadd.s32 %s2551, %s2555
          %s2557 = smul.addr %s2556, 128
          %s2558 = scalar_lea.hbm %s7, %s2557
          %s2559 = sshll.u32 %s2532, 4
          %s2560 = int_to_ptr.vmem [resolvable:$true] %s2559
          %2565 = dma.vmem_to_hbm [thread:$0]  %s2560, 1024, %s2558, %s2529, 256, 256, 16
        $region56: #{tpu_custom_call.1} parent=43 // pred_fallthru
          _
        // Predicated region
        $region57: #{tpu_custom_call.1} parent=43 // pred_check
          %p2566 = pneg %p252
        $region58: #{tpu_custom_call.1} parent=43 // pred_check_branch
          %2568 = sbr.rel (%p2566) target = $region60
        $region59: #{tpu_custom_call.1} parent=43 // pred_region
          %s2569 = smul.u32 2, %s43
          %s2571 = ssub.s32 1024, 1024
          %2572 = vsyncadd %s2534, %s2571
          %s2573 = smul.addr %s42, 8
          %s2574 = sadd.s32 %s2569, %s2573
          %s2575 = smul.addr %s2574, 128
          %s2576 = scalar_lea.hbm %s8, %s2575
          %s2577 = sshll.u32 %s2537, 4
          %s2578 = int_to_ptr.vmem [resolvable:$true] %s2577
          %2583 = dma.vmem_to_hbm [thread:$0]  %s2578, 1024, %s2576, %s2534, 256, 256, 16
        $region60: #{tpu_custom_call.1} parent=43 // pred_fallthru
          _
        // Predicated region
        $region61: #{tpu_custom_call.1} parent=43 // pred_check
          %p2584 = pneg %p280
        $region62: #{tpu_custom_call.1} parent=43 // pred_check_branch
          %2586 = sbr.rel (%p2584) target = $region64
        $region63: #{tpu_custom_call.1} parent=43 // pred_region
          %s2587 = smul.u32 2, %s43
          %s2589 = ssub.s32 1024, 1024
          %2590 = vsyncadd %s2539, %s2589
          %s2591 = smul.addr %s42, 8
          %s2592 = sadd.s32 %s2587, %s2591
          %s2593 = smul.addr %s2592, 128
          %s2594 = scalar_lea.hbm %s9, %s2593
          %s2595 = sshll.u32 %s2542, 4
          %s2596 = int_to_ptr.vmem [resolvable:$true] %s2595
          %2601 = dma.vmem_to_hbm [thread:$0]  %s2596, 1024, %s2594, %s2539, 256, 256, 16
        $region64: #{tpu_custom_call.1} parent=43 // pred_fallthru
          _
        // Predicated region
        $region65: #{tpu_custom_call.1} parent=43 // pred_check
          %p2602 = pneg %p308
        $region66: #{tpu_custom_call.1} parent=43 // pred_check_branch
          %2604 = sbr.rel (%p2602) target = $region68
        $region67: #{tpu_custom_call.1} parent=43 // pred_region
          %s2606 = ssub.s32 128, 128
          %2607 = vsyncadd %s2544, %s2606
          %s2608 = sadd.s32 %s43, %s42
          %s2609 = smul.addr %s2608, 128
          %s2610 = scalar_lea.hbm %s10, %s2609
          %s2612 = sshll.u32 %s2547, 4
          %s2613 = int_to_ptr.vmem [resolvable:$true] %s2612
          %2615 = dma.vmem_to_hbm [thread:$0]  %s2613, 128, %s2610, %s2544
        $region68: #{tpu_custom_call.1} parent=43 // pred_fallthru
          _
      $region44: #{tpu_custom_call.1} parent=5 // pred_fallthru
        _
      %p2616 = scmp.le.s32.totalorder 2, %s33
      // Predicated region
      $region69: #{tpu_custom_call.1} parent=5 // pred_check
        %p2617 = pneg %p2616
      $region70: #{tpu_custom_call.1} parent=5 // pred_check_branch
        %2619 = sbr.rel (%p2617) target = $region72
      $region71: #{tpu_custom_call.1} parent=5 // pred_region
        %s2620 = ssub.s32 %s33, 2
        // Predicated region
        $region73: #{tpu_custom_call.1} parent=71 // pred_check
          %p2621 = pneg %p230
        $region74: #{tpu_custom_call.1} parent=71 // pred_check_branch
          %2623 = sbr.rel (%p2621) target = $region76
        $region75: #{tpu_custom_call.1} parent=71 // pred_region
          %s2624 = sand.u32 %s215, 1
          %s2625 = scalar_lea.sflag [#allocation6], %s2624
          %s2626 = sand.u32 %s215, 1
          %s2627 = smul.addr %s2626, 64
          %s2628 = scalar_lea.vmem [#allocation9], %s2627
          %2629 = dma.done %s2625, 1024
        $region76: #{tpu_custom_call.1} parent=71 // pred_fallthru
          _
        // Predicated region
        $region77: #{tpu_custom_call.1} parent=71 // pred_check
          %p2630 = pneg %p258
        $region78: #{tpu_custom_call.1} parent=71 // pred_check_branch
          %2632 = sbr.rel (%p2630) target = $region80
        $region79: #{tpu_custom_call.1} parent=71 // pred_region
          %s2633 = sand.u32 %s39, 1
          %s2634 = scalar_lea.sflag [#allocation11], %s2633
          %s2635 = sand.u32 %s243, 1
          %s2636 = smul.addr %s2635, 64
          %s2637 = scalar_lea.vmem [#allocation10], %s2636
          %2638 = dma.done %s2634, 1024
        $region80: #{tpu_custom_call.1} parent=71 // pred_fallthru
          _
        // Predicated region
        $region81: #{tpu_custom_call.1} parent=71 // pred_check
          %p2639 = pneg %p286
        $region82: #{tpu_custom_call.1} parent=71 // pred_check_branch
          %2641 = sbr.rel (%p2639) target = $region84
        $region83: #{tpu_custom_call.1} parent=71 // pred_region
          %s2642 = sand.u32 %s39, 1
          %s2643 = scalar_lea.sflag [#allocation11], %s2642
          %s2644 = sand.u32 %s271, 1
          %s2645 = smul.addr %s2644, 64
          %s2646 = scalar_lea.vmem [#allocation12], %s2645
          %2647 = dma.done %s2643, 1024
        $region84: #{tpu_custom_call.1} parent=71 // pred_fallthru
          _
        // Predicated region
        $region85: #{tpu_custom_call.1} parent=71 // pred_check
          %p2648 = pneg %p314
        $region86: #{tpu_custom_call.1} parent=71 // pred_check_branch
          %2650 = sbr.rel (%p2648) target = $region88
        $region87: #{tpu_custom_call.1} parent=71 // pred_region
          %s2651 = sand.u32 %s299, 1
          %s2652 = scalar_lea.sflag [#allocation14], %s2651
          %s2653 = sand.u32 %s299, 1
          %s2654 = smul.addr %s2653, 8
          %s2655 = scalar_lea.vmem [#allocation13], %s2654
          %2656 = dma.done %s2652, 128
        $region88: #{tpu_custom_call.1} parent=71 // pred_fallthru
          _
      $region72: #{tpu_custom_call.1} parent=5 // pred_fallthru
        _
    $region6: #{tpu_custom_call.1} parent=1 // loop_footer
      %s37 = sadd.s32 1, %s33
    $region7: #{tpu_custom_call.1} parent=1 // loop_footer_branch
      %32 = sbr.rel target = $region3
    $region8: #{tpu_custom_call.1} parent=1 // loop_exit
      _
    %2657 = vsyncpa [#allocation5], 1
    %s2658 = scalar_lea.sflag [#allocation5], 1
    %2659 = vsyncpa %s2658, 1
    %2660 = vsyncpa [#allocation8], 1
    %s2661 = scalar_lea.sflag [#allocation8], 1
    %2662 = vsyncpa %s2661, 1
    %2663 = vsyncpa [#allocation6], 1
    %s2664 = scalar_lea.sflag [#allocation6], 1
    %2665 = vsyncpa %s2664, 1
    %2666 = vsyncpa [#allocation11], 1
    %s2667 = scalar_lea.sflag [#allocation11], 1
    %2668 = vsyncpa %s2667, 1
    %2669 = vsyncpa [#allocation14], 1
    %s2670 = scalar_lea.sflag [#allocation14], 1
    %2671 = vsyncpa %s2670, 1

</llo_original>
